<compile_context>
chip_gen: v5e
topology: v5e:2x2
jax: 0.10.0
libtpu: 0.0.40
codegen_flags: <defaults>
</compile_context>

<pallas_src>
import math

import jax
import jax.numpy as jnp
from jax.experimental import pallas as pl
from jax.experimental.pallas import tpu as pltpu


def _round_up(x, m):
    return ((x + m - 1) // m) * m


def _pick_tile(dim, want, align=128):
    """Largest multiple of `align` that divides `dim` and is <= want.

    `dim` must already be a multiple of `align`.
    """
    t = min(want, dim)
    t = max((t // align) * align, align)
    while dim % t != 0:
        t -= align
    return t


def _dense_kernel(x_ref, w_ref, b_ref, o_ref, acc_ref):
    """One (tm, tn) output tile accumulated over the K grid axis."""
    k = pl.program_id(2)

    @pl.when(k == 0)
    def _():
        acc_ref[...] = jnp.zeros_like(acc_ref)

    # MXU matmul with f32 accumulation.
    acc_ref[...] += jnp.dot(x_ref[...], w_ref[...],
                            preferred_element_type=jnp.float32)

    @pl.when(k == pl.num_programs(2) - 1)
    def _():
        # Bias add in f32, identity activation, cast to output dtype.
        o_ref[...] = (acc_ref[...] + b_ref[...].astype(jnp.float32)
                      ).astype(o_ref.dtype)


def dense_forward(x, w, b=None, *, tile_m=512, tile_n=512, tile_k=512,
                  compute_dtype=None):
    """Pallas forward of Dense: y = x @ w (+ b), sigma = identity, no BN.

    x: (N, in_features), w: (in_features, out_features), b: (out_features,) or None.
    Returns (N, out_features) in x.dtype.
    """
    N, K = x.shape
    Kw, C = w.shape
    assert K == Kw, "in_features mismatch between x and weight"
    out_dtype = x.dtype

    # ---- Small-problem fast path (K too small for the MXU, or tiny total work):
    # per-grid-step overhead + wrapper pad/slice would dominate -> plain XLA.
    if K < 128 or (N * K * C) < (1 << 20):
        y = jnp.dot(x, w, preferred_element_type=jnp.float32)
        if b is not None:
            y = y + b.astype(jnp.float32)
        return y.astype(out_dtype)

    # Optional bandwidth optimization (recommended bf16 on v6e/v7x); default off
    # to keep exact f32 semantics of the PyTorch module.
    if compute_dtype is not None:
        x = x.astype(compute_dtype)
        w = w.astype(compute_dtype)

    # ---- Pad feature dims to lane multiples (zeros: contributes nothing) -----
    K_pad = _round_up(K, 128)
    C_pad = _round_up(C, 128)
    if K_pad != K:
        x = jnp.pad(x, ((0, 0), (0, K_pad - K)))
        w = jnp.pad(w, ((0, K_pad - K), (0, 0)))
    if C_pad != C:
        w = jnp.pad(w, ((0, 0), (0, C_pad - C)))
    if b is None:
        b2 = jnp.zeros((1, C_pad), dtype=jnp.float32)
    else:
        b2 = jnp.pad(b.astype(jnp.float32).reshape(1, C), ((0, 0), (0, C_pad - C)))

    # ---- Tile selection (MXU/lane aligned, VMEM-bounded) ----------------------
    tk = _pick_tile(K_pad, tile_k, 128)
    tn = _pick_tile(C_pad, tile_n, 128)
    if N <= tile_m:
        tm = N                       # single (possibly non-multiple-of-8) row block
    else:
        tm = max(8, (tile_m // 8) * 8)
    grid = (pl.cdiv(N, tm), C_pad // tn, K_pad // tk)

    # ---- VMEM budget: double-buffered x/w/out blocks + f32 accumulator --------
    bx = jnp.dtype(x.dtype).itemsize
    bw = jnp.dtype(w.dtype).itemsize
    bo = jnp.dtype(out_dtype).itemsize
    block_bytes = (2 * tm * tk * bx          # x (double-buffered)
                   + 2 * tk * tn * bw        # w (double-buffered)
                   + 2 * tm * tn * bo        # out (double-buffered)
                   + tm * tn * 4             # accumulator scratch
                   + 2 * 8 * tn * 4)         # bias
    vmem_limit = int(min(max(block_bytes * 5 // 4 + (4 << 20), 32 << 20), 64 << 20))

    flops = 2 * N * K * C
    bytes_accessed = (N * K * bx + K * C * bw + C * 4 + N * C * bo)

    y = pl.pallas_call(
        _dense_kernel,
        out_shape=jax.ShapeDtypeStruct((N, C_pad), out_dtype),
        grid=grid,
        in_specs=[
            pl.BlockSpec((tm, tk), lambda i, j, k: (i, k)),   # x tile
            pl.BlockSpec((tk, tn), lambda i, j, k: (k, j)),   # w tile
            pl.BlockSpec((1, tn), lambda i, j, k: (0, j)),    # bias tile
        ],
        out_specs=pl.BlockSpec((tm, tn), lambda i, j, k: (i, j)),
        scratch_shapes=[pltpu.VMEM((tm, tn), jnp.float32)],
        compiler_params=pltpu.CompilerParams(
            dimension_semantics=("parallel", "parallel", "arbitrary"),
            vmem_limit_bytes=vmem_limit),
        cost_estimate=pl.CostEstimate(
            flops=flops, transcendentals=0, bytes_accessed=bytes_accessed),
    )(x, w, b2)

    # Slice back to true out_features (padded columns are zero + bias-pad = 0).
    if C_pad != C:
        y = y[:, :C]
    return y

# TODO(synk): BatchNorm1d path (withbn=True) not implemented; module default is withbn=False.


if __name__ == "__main__":
    key = jax.random.PRNGKey(0)
    k1, k2, k3, k4, k5, k6 = jax.random.split(key, 6)

    # --- Test 1: shapes implied by the module example, Dense(32 -> 16) on 8 rows.
    # (Hits the small-problem XLA fast path; exact f32 semantics.)
    N, in_features, out_features = 8, 32, 16
    stdv = 1.0 / math.sqrt(out_features)          # reset_parameters(): 1/sqrt(weight.size(1))
    w = jax.random.uniform(k1, (in_features, out_features), jnp.float32, -stdv, stdv)
    b = jax.random.uniform(k2, (out_features,), jnp.float32, -stdv, stdv)
    x = jax.random.normal(k3, (N, in_features), jnp.float32)

    y = dense_forward(x, w, b)
    jax.block_until_ready(y)
    y_ref = x @ w + b
    assert y.shape == (N, out_features)
    assert jnp.allclose(y, y_ref, atol=1e-5, rtol=1e-5)

    # --- Test 2: larger shapes that exercise the Pallas path
    # (ragged last row block, C padded to 256, K/C tiling, f32 accumulate).
    N2, K2, C2 = 520, 256, 192
    stdv2 = 1.0 / math.sqrt(C2)
    w2 = jax.random.uniform(k4, (K2, C2), jnp.float32, -stdv2, stdv2)
    b2 = jax.random.uniform(k5, (C2,), jnp.float32, -stdv2, stdv2)
    x2 = jax.random.normal(k6, (N2, K2), jnp.float32)

    y2 = dense_forward(x2, w2, b2)
    jax.block_until_ready(y2)
    y2_ref = x2 @ w2 + b2
    assert y2.shape == (N2, C2)
    # MXU f32-matmul pass count may differ slightly from the XLA reference.
    assert jnp.allclose(y2, y2_ref, atol=1e-2, rtol=1e-2)

    print("KERNEL_OK")
</pallas_src>

<mosaic_0001>
module attributes {stable_mosaic.version = 11 : i64} {
  func.func @_dense_kernel(%arg0: i32, %arg1: i32, %arg2: i32, %arg3: memref<512x256xf32, #tpu.memory_space<vmem>>, %arg4: memref<256x256xf32, #tpu.memory_space<vmem>>, %arg5: memref<1x256xf32, #tpu.memory_space<vmem>>, %arg6: memref<512x256xf32, #tpu.memory_space<vmem>>, %arg7: memref<512x256xf32, #tpu.memory_space<vmem>>) attributes {dimension_semantics = [#tpu.dimension_semantics<parallel>, #tpu.dimension_semantics<parallel>, #tpu.dimension_semantics<arbitrary>], iteration_bounds = array<i64: 2, 1, 1>, scalar_prefetch = 0 : i64, scratch_operands = 1 : i64, tpu.core_type = #tpu.core_type<tc>, window_params = [{transform_indices = @transform_0, window_bounds = array<i64: 512, 256>}, {transform_indices = @transform_1, window_bounds = array<i64: 256, 256>}, {transform_indices = @transform_2, window_bounds = array<i64: 1, 256>}, {transform_indices = @transform_3, window_bounds = array<i64: 512, 256>}]} {
    %c0_i32 = arith.constant 0 : i32
    %0 = arith.cmpi eq, %arg2, %c0_i32 : i32
    %1 = arith.extui %0 : i1 to i32
    %c0_i32_0 = arith.constant 0 : i32
    %2 = arith.cmpi ne, %1, %c0_i32_0 : i32
    scf.if %2 {
      %cst_10 = arith.constant 0.000000e+00 : f32
      %12 = vector.broadcast %cst_10 : f32 to vector<512x256xf32>
      %c0_11 = arith.constant 0 : index
      %c0_12 = arith.constant 0 : index
      %13 = vector.load %arg7[%c0_11, %c0_12] : memref<512x256xf32, #tpu.memory_space<vmem>>, vector<512x256xf32>
      tpu.vector_store %arg7[%c0_11, %c0_12], %12 {strides = array<i32>} : memref<512x256xf32, #tpu.memory_space<vmem>>, vector<512x256xf32>,
    } else {
    }
    %c0 = arith.constant 0 : index
    %c0_1 = arith.constant 0 : index
    %3 = vector.load %arg7[%c0, %c0_1] : memref<512x256xf32, #tpu.memory_space<vmem>>, vector<512x256xf32>
    %c0_2 = arith.constant 0 : index
    %c0_3 = arith.constant 0 : index
    %4 = vector.load %arg3[%c0_2, %c0_3] : memref<512x256xf32, #tpu.memory_space<vmem>>, vector<512x256xf32>
    %c0_4 = arith.constant 0 : index
    %c0_5 = arith.constant 0 : index
    %5 = vector.load %arg4[%c0_4, %c0_5] : memref<256x256xf32, #tpu.memory_space<vmem>>, vector<256x256xf32>
    %cst = arith.constant dense<0.000000e+00> : vector<512x256xf32>
    %6 = tpu.matmul %4, %5, %cst {dimension_numbers = #tpu.dot_dimension_numbers<[1], [0], [0], [1], [0, 0, 1, 1], [], []>} : vector<512x256xf32>, vector<256x256xf32>, vector<512x256xf32> -> vector<512x256xf32>
    %7 = arith.addf %3, %6 : vector<512x256xf32>
    %c0_6 = arith.constant 0 : index
    %c0_7 = arith.constant 0 : index
    %8 = vector.load %arg7[%c0_6, %c0_7] : memref<512x256xf32, #tpu.memory_space<vmem>>, vector<512x256xf32>
    tpu.vector_store %arg7[%c0_6, %c0_7], %7 {strides = array<i32>} : memref<512x256xf32, #tpu.memory_space<vmem>>, vector<512x256xf32>,
    %c0_i32_8 = arith.constant 0 : i32
    %9 = arith.cmpi eq, %arg2, %c0_i32_8 : i32
    %10 = arith.extui %9 : i1 to i32
    %c0_i32_9 = arith.constant 0 : i32
    %11 = arith.cmpi ne, %10, %c0_i32_9 : i32
    scf.if %11 {
      %c0_10 = arith.constant 0 : index
      %c0_11 = arith.constant 0 : index
      %12 = vector.load %arg7[%c0_10, %c0_11] : memref<512x256xf32, #tpu.memory_space<vmem>>, vector<512x256xf32>
      %c0_12 = arith.constant 0 : index
      %c0_13 = arith.constant 0 : index
      %13 = vector.load %arg5[%c0_12, %c0_13] : memref<1x256xf32, #tpu.memory_space<vmem>>, vector<1x256xf32>
      %14 = vector.broadcast %13 : vector<1x256xf32> to vector<512x256xf32>
      %15 = arith.addf %12, %14 : vector<512x256xf32>
      %c0_14 = arith.constant 0 : index
      %c0_15 = arith.constant 0 : index
      %16 = vector.load %arg6[%c0_14, %c0_15] : memref<512x256xf32, #tpu.memory_space<vmem>>, vector<512x256xf32>
      tpu.vector_store %arg6[%c0_14, %c0_15], %15 {strides = array<i32>} : memref<512x256xf32, #tpu.memory_space<vmem>>, vector<512x256xf32>,
    } else {
    }
    return
  }
  func.func @transform_0(%arg0: i32, %arg1: i32, %arg2: i32) -> (i32, i32) {
    %c0_i32 = arith.constant 0 : i32
    return %arg0, %arg2 : i32, i32
  }
  func.func @transform_1(%arg0: i32, %arg1: i32, %arg2: i32) -> (i32, i32) {
    %c0_i32 = arith.constant 0 : i32
    return %arg2, %arg1 : i32, i32
  }
  func.func @transform_2(%arg0: i32, %arg1: i32, %arg2: i32) -> (i32, i32) {
    %c0_i32 = arith.constant 0 : i32
    %c0_i32_0 = arith.constant 0 : i32
    return %c0_i32, %arg1 : i32, i32
  }
  func.func @transform_3(%arg0: i32, %arg1: i32, %arg2: i32) -> (i32, i32) {
    %c0_i32 = arith.constant 0 : i32
    return %arg0, %arg1 : i32, i32
  }
}

</mosaic_0001>

<llo_original>
// kernel: tpu_custom_call.1
$region0: #{tpu_custom_call.1}
  #allocation0 [shape = 'u32[]', space=smem, size = 0x4, offset = 0x4, fixed_abs, tag = 'smem constant byte address 0x4 - core index']
  #allocation1 [shape = 'u32[72,128]{1,0:T(1,128)}', space=vmem, size = 0x9000, scoped, tag = 'internal scratch']
  #allocation2 [shape = 'f32[512,256]{1,0:T(8,128)}', space=vmem, size = 0x80000, scoped, tag = 'scratch operand']
  %s0 = inlined_call_operand.hbm [shape: f32[520,256], index: 0, kind: input, shape index: {}]
  %s1 = inlined_call_operand.hbm [shape: f32[256,256], index: 1, kind: input, shape index: {}]
  %s2 = inlined_call_operand.hbm [shape: f32[1,256], index: 2, kind: input, shape index: {}]
  %s3 = inlined_call_operand.hbm [shape: f32[520,256], index: 3, kind: output, shape index: {}]
  %s4 = sld [smem:[#allocation0]]
  $region65: #{tpu_custom_call.1} parent=0
    _
  %s6 = ssub.s32 1, %s4
  %s7 = scalar_select 0, %s6, %s4
  $region1: #{tpu_custom_call.1} parent=0
    #allocation3 [shape = 'u8[1048576]{0}', space=vmem, size = 0x100000, scoped, tag = 'input window, operand 0']
    #allocation4 [shape = 's32[2]{0}', space=sflag, size = 0x8, scoped, tag = 'scoped memory for tpu_custom_call.1']
    #allocation5 [shape = 's32[2]{0}', space=sflag, size = 0x8, scoped, tag = 'scoped memory for tpu_custom_call.1']
    #allocation6 [shape = 'u8[262144]{0}', space=vmem, size = 0x40000, scoped, tag = 'input window, operand 1, single buffered']
    #allocation7 [shape = 's32[1]{0}', space=sflag, size = 0x4, scoped, tag = 'scoped memory for tpu_custom_call.1']
    #allocation8 [shape = 'u8[1024]{0}', space=vmem, size = 0x400, scoped, tag = 'input window, operand 2, single buffered']
    #allocation9 [shape = 'u8[1048576]{0}', space=vmem, size = 0x100000, scoped, tag = 'output window, operand 0']
    %8 = vsyncpa [#allocation4], 0
    %s9 = scalar_lea.sflag [#allocation4], 1
    %10 = vsyncpa %s9, 0
    %11 = vsyncpa [#allocation7], 0
    %12 = vsyncpa [#allocation5], 0
    %s13 = scalar_lea.sflag [#allocation5], 1
    %14 = vsyncpa %s13, 0
    loop: start=0, step=1, limit=4
    $region2: #{tpu_custom_call.1} parent=1 // loop_pre_header
      _
    $region3: #{tpu_custom_call.1} parent=1 // loop_header
      %s16 = sphi 0, %s20
      %p17 = scmp.ge.s32.totalorder %s16, 4
      %s23 = sphi 0, %s42
      %s24 = sphi 0, %s38
      %s25 = sphi 0, %s34
      %s26 = sphi 0, %s23
      %s27 = sphi 0, %s24
      %s28 = sphi 0, %s25
      %s29 = sphi 0, %s26
      %s30 = sphi 0, %s27
      %s31 = sphi 0, %s28
      %s47 = sphi 0, %s49
      %s50 = sphi 0, %s47
      %s51 = sphi 0, %s50
      %s67 = sphi 0, %s51
      %s75 = sphi 0, %s77
      %s78 = sphi 0, %s75
      %s79 = sphi 0, %s78
      %s95 = sphi 0, %s79
      %s101 = sphi 0, %s103
      %s104 = sphi 0, %s101
      %s105 = sphi 0, %s104
      %s121 = sphi 0, %s105
      %s129 = sphi 0, %s131
      %s132 = sphi 0, %s129
      %s133 = sphi 0, %s132
      %s149 = sphi 0, %s133
    $region4: #{tpu_custom_call.1} parent=1 // loop_header_branch
      %19 = sbr.rel (%p17) target = $region8
    $region5: #{tpu_custom_call.1} parent=1 // loop_body
      %s21 = ssub.s32 %s16, 1
      %s22 = ssub.s32 %s16, 2
      %s32 = sadd.s32 1, %s25
      %p33 = scmp.ge.s32.totalorder %s32, 1
      %s34 = scalar_select %p33, 0, %s32
      %s35 = sadd.s32 1, %s24
      %s36 = scalar_select %p33, %s35, %s24
      %p37 = scmp.ge.s32.totalorder %s36, 1
      %s38 = scalar_select %p37, 0, %s36
      %s39 = sadd.s32 1, %s23
      %s40 = scalar_select %p37, %s39, %s23
      %p41 = scmp.ge.s32.totalorder %s40, 2
      %s42 = scalar_select %p41, 0, %s40
      %s43 = ssub.s32 %s23, %s42
      %s44 = ssub.s32 %s25, %s34
      %s45 = sor.u32 %s43, %s44
      %p46 = scmp.eq.s32.totalorder %s45, 0
      %s48 = sadd.s32 %s47, 1
      %s49 = scalar_select %p46, %s47, %s48
      %p52 = pneg %p46
      %p53 = scmp.eq.s32.totalorder %s16, 1
      %p54 = por %p52, %p53
      %p55 = scmp.ne.s32.totalorder %s47, %s50
      %p56 = scmp.eq.s32.totalorder %s16, 0
      %p57 = por %p55, %p56
      %p58 = scmp.ne.s32.totalorder %s47, %s50
      %p59 = scmp.eq.s32.totalorder %s21, 1
      %p60 = por %p58, %p59
      %p61 = scmp.ne.s32.totalorder %s50, %s51
      %p62 = scmp.eq.s32.totalorder %s21, 0
      %p63 = por %p61, %p62
      %p64 = scmp.ne.s32.totalorder %s50, %s51
      %p65 = scmp.eq.s32.totalorder %s22, 1
      %p66 = por %p64, %p65
      %p68 = scmp.ne.s32.totalorder %s51, %s67
      %p69 = scmp.eq.s32.totalorder %s22, 0
      %p70 = por %p68, %p69
      %s71 = ssub.s32 %s25, %s34
      %s72 = ssub.s32 %s24, %s38
      %s73 = sor.u32 %s71, %s72
      %p74 = scmp.eq.s32.totalorder %s73, 0
      %s76 = sadd.s32 %s75, 1
      %s77 = scalar_select %p74, %s75, %s76
      %p80 = pneg %p74
      %p81 = scmp.eq.s32.totalorder %s16, 1
      %p82 = por %p80, %p81
      %p83 = scmp.ne.s32.totalorder %s75, %s78
      %p84 = scmp.eq.s32.totalorder %s16, 0
      %p85 = por %p83, %p84
      %p86 = scmp.ne.s32.totalorder %s75, %s78
      %p87 = scmp.eq.s32.totalorder %s21, 1
      %p88 = por %p86, %p87
      %p89 = scmp.ne.s32.totalorder %s78, %s79
      %p90 = scmp.eq.s32.totalorder %s21, 0
      %p91 = por %p89, %p90
      %p92 = scmp.ne.s32.totalorder %s78, %s79
      %p93 = scmp.eq.s32.totalorder %s22, 1
      %p94 = por %p92, %p93
      %p96 = scmp.ne.s32.totalorder %s79, %s95
      %p97 = scmp.eq.s32.totalorder %s22, 0
      %p98 = por %p96, %p97
      %s99 = ssub.s32 %s24, %s38
      %p100 = scmp.eq.s32.totalorder %s99, 0
      %s102 = sadd.s32 %s101, 1
      %s103 = scalar_select %p100, %s101, %s102
      %p106 = pneg %p100
      %p107 = scmp.eq.s32.totalorder %s16, 1
      %p108 = por %p106, %p107
      %p109 = scmp.ne.s32.totalorder %s101, %s104
      %p110 = scmp.eq.s32.totalorder %s16, 0
      %p111 = por %p109, %p110
      %p112 = scmp.ne.s32.totalorder %s101, %s104
      %p113 = scmp.eq.s32.totalorder %s21, 1
      %p114 = por %p112, %p113
      %p115 = scmp.ne.s32.totalorder %s104, %s105
      %p116 = scmp.eq.s32.totalorder %s21, 0
      %p117 = por %p115, %p116
      %p118 = scmp.ne.s32.totalorder %s104, %s105
      %p119 = scmp.eq.s32.totalorder %s22, 1
      %p120 = por %p118, %p119
      %p122 = scmp.ne.s32.totalorder %s105, %s121
      %p123 = scmp.eq.s32.totalorder %s22, 0
      %p124 = por %p122, %p123
      %s125 = ssub.s32 %s23, %s42
      %s126 = ssub.s32 %s24, %s38
      %s127 = sor.u32 %s125, %s126
      %p128 = scmp.eq.s32.totalorder %s127, 0
      %s130 = sadd.s32 %s129, 1
      %s131 = scalar_select %p128, %s129, %s130
      %p134 = pneg %p128
      %p135 = scmp.eq.s32.totalorder %s16, 1
      %p136 = por %p134, %p135
      %p137 = scmp.ne.s32.totalorder %s129, %s132
      %p138 = scmp.eq.s32.totalorder %s16, 0
      %p139 = por %p137, %p138
      %p140 = scmp.ne.s32.totalorder %s129, %s132
      %p141 = scmp.eq.s32.totalorder %s21, 1
      %p142 = por %p140, %p141
      %p143 = scmp.ne.s32.totalorder %s132, %s133
      %p144 = scmp.eq.s32.totalorder %s21, 0
      %p145 = por %p143, %p144
      %p146 = scmp.ne.s32.totalorder %s132, %s133
      %p147 = scmp.eq.s32.totalorder %s22, 1
      %p148 = por %p146, %p147
      %p150 = scmp.ne.s32.totalorder %s133, %s149
      %p151 = scmp.eq.s32.totalorder %s22, 0
      %p152 = por %p150, %p151
      %p153 = scmp.le.s32.totalorder 1, %s16
      %p154 = scmp.lt.s32.totalorder %s16, 3
      %p155 = pnand %p153, %p154
      %p156 = pneg %p155
      // Predicated region
      $region9: #{tpu_custom_call.1} parent=5 // pred_check
        _
      $region10: #{tpu_custom_call.1} parent=5 // pred_check_branch
        %158 = sbr.rel (%p155) target = $region12
      $region11: #{tpu_custom_call.1} parent=5 // pred_region
        %s159 = ssub.s32 %s16, 1
        // Predicated region
        $region13: #{tpu_custom_call.1} parent=11 // pred_check
          %p160 = pneg %p91
        $region14: #{tpu_custom_call.1} parent=11 // pred_check_branch
          %162 = sbr.rel (%p160) target = $region16
        $region15: #{tpu_custom_call.1} parent=11 // pred_region
          %s163 = smul.u32 32, %s28
          %s164 = smul.u32 2, %s27
          %166 = vsyncadd [#allocation7], 0
          %s167 = smul.addr %s163, 2
          %s168 = sadd.s32 %s164, %s167
          %s169 = smul.addr %s168, 8
          %s170 = scalar_lea.hbm %s1, %s169
          %s171 = sshll.u32 %s170, 4
          %s172 = int_to_ptr.hbm [resolvable:$true] %s171
          %s173 = sshll.u32 [#allocation6], 4
          %s174 = int_to_ptr.vmem [resolvable:$true] %s173
          %179 = dma.hbm_to_vmem [thread:$0]  %s172, 8192, %s174, [#allocation7], 256, 256, 16
        $region16: #{tpu_custom_call.1} parent=11 // pred_fallthru
          _
        // Predicated region
        $region17: #{tpu_custom_call.1} parent=11 // pred_check
          %p180 = pneg %p117
        $region18: #{tpu_custom_call.1} parent=11 // pred_check_branch
          %182 = sbr.rel (%p180) target = $region20
        $region19: #{tpu_custom_call.1} parent=11 // pred_region
          %s183 = smul.u32 2, %s27
          %185 = vsyncadd [#allocation7], 0
          %s186 = scalar_lea.hbm %s2, %s183
          %s188 = sshll.u32 %s186, 4
          %s189 = int_to_ptr.hbm [resolvable:$true] %s188
          %s190 = sshll.u32 [#allocation8], 4
          %s191 = int_to_ptr.vmem [resolvable:$true] %s190
          %193 = dma.hbm_to_vmem [thread:$0]  %s189, 32, %s191, [#allocation7]
        $region20: #{tpu_custom_call.1} parent=11 // pred_fallthru
          _
      $region12: #{tpu_custom_call.1} parent=5 // pred_fallthru
        _
      %p194 = scmp.lt.s32.totalorder %s16, 2
      // Predicated region
      $region21: #{tpu_custom_call.1} parent=5 // pred_check
        %p195 = pneg %p194
      $region22: #{tpu_custom_call.1} parent=5 // pred_check_branch
        %197 = sbr.rel (%p195) target = $region24
      $region23: #{tpu_custom_call.1} parent=5 // pred_region
        // Predicated region
        $region25: #{tpu_custom_call.1} parent=23 // pred_check
          %p198 = pneg %p57
        $region26: #{tpu_custom_call.1} parent=23 // pred_check_branch
          %200 = sbr.rel (%p198) target = $region28
        $region27: #{tpu_custom_call.1} parent=23 // pred_region
          %s201 = sand.u32 %s47, 1
          %s202 = scalar_lea.sflag [#allocation4], %s201
          %s203 = sand.u32 %s47, 1
          %s204 = smul.addr %s203, 1024
          %s205 = scalar_lea.vmem [#allocation3], %s204
          %s206 = smul.u32 64, %s23
          %s207 = smul.u32 2, %s25
          %s208 = ssub.s32 65, %s206
          %p209 = scmp.lt.s32.totalorder %s208, 64
          %s210 = scalar_select %p209, %s208, 64
          %s211 = smul.u32 8, %s210
          %s212 = smul.u32 %s211, 2
          %s213 = ssub.s32 1024, %s212
          %s214 = sshll.u32 %s213, 4
          %215 = vsyncadd %s202, %s214
          %p216 = scmp.ne.s32.totalorder 0, %s212
          %s217 = smul.addr %s206, 2
          %s218 = sadd.s32 %s207, %s217
          %s219 = smul.addr %s218, 8
          %s220 = scalar_lea.hbm %s0, %s219
          %s221 = smul.u32 16, %s210
          %s222 = sshll.u32 %s220, 4
          %s223 = int_to_ptr.hbm [resolvable:$true] %s222
          %s224 = sshll.u32 %s205, 4
          %s225 = int_to_ptr.vmem [resolvable:$true] %s224
          %s226 = sshll.u32 %s221, 4
          %230 = dma.hbm_to_vmem [thread:$0]  (%p216), %s223, %s226, %s225, %s202, 256, 256, 16
        $region28: #{tpu_custom_call.1} parent=23 // pred_fallthru
          _
      $region24: #{tpu_custom_call.1} parent=5 // pred_fallthru
        _
      %p231 = scmp.le.s32.totalorder 1, %s16
      %p232 = scmp.lt.s32.totalorder %s16, 3
      %p233 = pnand %p231, %p232
      %p234 = pneg %p233
      // Predicated region
      $region29: #{tpu_custom_call.1} parent=5 // pred_check
        _
      $region30: #{tpu_custom_call.1} parent=5 // pred_check_branch
        %236 = sbr.rel (%p233) target = $region32
      $region31: #{tpu_custom_call.1} parent=5 // pred_region
        %s237 = ssub.s32 %s16, 1
        %s238 = sand.u32 %s50, 1
        %s239 = scalar_lea.sflag [#allocation4], %s238
        %s240 = sand.u32 %s50, 1
        %s241 = smul.addr %s240, 1024
        %s242 = scalar_lea.vmem [#allocation3], %s241
        // Predicated region
        $region33: #{tpu_custom_call.1} parent=31 // pred_check
          %p243 = pneg %p63
        $region34: #{tpu_custom_call.1} parent=31 // pred_check_branch
          %245 = sbr.rel (%p243) target = $region36
        $region35: #{tpu_custom_call.1} parent=31 // pred_region
          %247 = dma.done %s239, 16384
        $region36: #{tpu_custom_call.1} parent=31 // pred_fallthru
          _
        // Predicated region
        $region37: #{tpu_custom_call.1} parent=31 // pred_check
          %p248 = pneg %p91
        $region38: #{tpu_custom_call.1} parent=31 // pred_check_branch
          %250 = sbr.rel (%p248) target = $region40
        $region39: #{tpu_custom_call.1} parent=31 // pred_region
          %252 = dma.done [#allocation7], 8192
        $region40: #{tpu_custom_call.1} parent=31 // pred_fallthru
          _
        // Predicated region
        $region41: #{tpu_custom_call.1} parent=31 // pred_check
          %p253 = pneg %p117
        $region42: #{tpu_custom_call.1} parent=31 // pred_check_branch
          %255 = sbr.rel (%p253) target = $region44
        $region43: #{tpu_custom_call.1} parent=31 // pred_region
          %257 = dma.done [#allocation7], 32
        $region44: #{tpu_custom_call.1} parent=31 // pred_fallthru
          _
        %s258 = sand.u32 %s50, 1
        %s259 = scalar_lea.sflag [#allocation4], %s258
        %s260 = sand.u32 %s50, 1
        %s261 = smul.addr %s260, 1024
        %s262 = scalar_lea.vmem [#allocation3], %s261
        %p263 = pneg %p63
        %p264 = pneg %p60
        %p265 = pneg %p91
        %p266 = pneg %p88
        %p267 = pneg %p117
        %p268 = pneg %p114
        %p269 = pneg %p145
        %p270 = pneg %p142
        %s271 = sand.u32 %s132, 1
        %s272 = scalar_lea.sflag [#allocation5], %s271
        %s273 = sand.u32 %s132, 1
        %s274 = smul.addr %s273, 1024
        %s275 = scalar_lea.vmem [#allocation9], %s274
        %s276 = smul.u32 64, %s26
        %s277 = smul.u32 2, %s28
        %s278 = ssub.s32 65, %s276
        %p279 = scmp.lt.s32.totalorder %s278, 64
        %s280 = scalar_select %p279, %s278, 64
        %s281 = smul.u32 8, %s280
        %s282 = smul.u32 %s281, 2
        %s283 = smul.u32 32, %s28
        %s284 = smul.u32 2, %s27
        %s285 = smul.u32 2, %s27
        %s286 = smul.u32 64, %s26
        %s287 = smul.u32 2, %s27
        %s288 = ssub.s32 65, %s286
        %p289 = scmp.lt.s32.totalorder %s288, 64
        %s290 = scalar_select %p289, %s288, 64
        %s291 = smul.u32 8, %s290
        %s292 = smul.u32 %s291, 2
        %p293 = scmp.eq.s32.totalorder %s28, 0
        // Predicated region
        $region45: #{tpu_custom_call.1} parent=31 // pred_check
          %p294 = pneg %p293
        $region46: #{tpu_custom_call.1} parent=31 // pred_check_branch
          %296 = sbr.rel (%p294) target = $region48
        $region47: #{tpu_custom_call.1} parent=31 // pred_region
          %297 = vst [vmem:[#allocation2] sm:$0xff] 0.0
          %298 = vst [vmem:[#allocation2 + $0x8] sm:$0xff] 0.0
          %299 = vst [vmem:[#allocation2 + $0x10] sm:$0xff] 0.0
          %300 = vst [vmem:[#allocation2 + $0x18] sm:$0xff] 0.0
          %301 = vst [vmem:[#allocation2 + $0x20] sm:$0xff] 0.0
          %302 = vst [vmem:[#allocation2 + $0x28] sm:$0xff] 0.0
          %303 = vst [vmem:[#allocation2 + $0x30] sm:$0xff] 0.0
          %304 = vst [vmem:[#allocation2 + $0x38] sm:$0xff] 0.0
          %305 = vst [vmem:[#allocation2 + $0x40] sm:$0xff] 0.0
          %306 = vst [vmem:[#allocation2 + $0x48] sm:$0xff] 0.0
          %307 = vst [vmem:[#allocation2 + $0x50] sm:$0xff] 0.0
          %308 = vst [vmem:[#allocation2 + $0x58] sm:$0xff] 0.0
          %309 = vst [vmem:[#allocation2 + $0x60] sm:$0xff] 0.0
          %310 = vst [vmem:[#allocation2 + $0x68] sm:$0xff] 0.0
          %311 = vst [vmem:[#allocation2 + $0x70] sm:$0xff] 0.0
          %312 = vst [vmem:[#allocation2 + $0x78] sm:$0xff] 0.0
          %313 = vst [vmem:[#allocation2 + $0x80] sm:$0xff] 0.0
          %314 = vst [vmem:[#allocation2 + $0x88] sm:$0xff] 0.0
          %315 = vst [vmem:[#allocation2 + $0x90] sm:$0xff] 0.0
          %316 = vst [vmem:[#allocation2 + $0x98] sm:$0xff] 0.0
          %317 = vst [vmem:[#allocation2 + $0xa0] sm:$0xff] 0.0
          %318 = vst [vmem:[#allocation2 + $0xa8] sm:$0xff] 0.0
          %319 = vst [vmem:[#allocation2 + $0xb0] sm:$0xff] 0.0
          %320 = vst [vmem:[#allocation2 + $0xb8] sm:$0xff] 0.0
          %321 = vst [vmem:[#allocation2 + $0xc0] sm:$0xff] 0.0
          %322 = vst [vmem:[#allocation2 + $0xc8] sm:$0xff] 0.0
          %323 = vst [vmem:[#allocation2 + $0xd0] sm:$0xff] 0.0
          %324 = vst [vmem:[#allocation2 + $0xd8] sm:$0xff] 0.0
          %325 = vst [vmem:[#allocation2 + $0xe0] sm:$0xff] 0.0
          %326 = vst [vmem:[#allocation2 + $0xe8] sm:$0xff] 0.0
          %327 = vst [vmem:[#allocation2 + $0xf0] sm:$0xff] 0.0
          %328 = vst [vmem:[#allocation2 + $0xf8] sm:$0xff] 0.0
          %329 = vst [vmem:[#allocation2 + $0x100] sm:$0xff] 0.0
          %330 = vst [vmem:[#allocation2 + $0x108] sm:$0xff] 0.0
          %331 = vst [vmem:[#allocation2 + $0x110] sm:$0xff] 0.0
          %332 = vst [vmem:[#allocation2 + $0x118] sm:$0xff] 0.0
          %333 = vst [vmem:[#allocation2 + $0x120] sm:$0xff] 0.0
          %334 = vst [vmem:[#allocation2 + $0x128] sm:$0xff] 0.0
          %335 = vst [vmem:[#allocation2 + $0x130] sm:$0xff] 0.0
          %336 = vst [vmem:[#allocation2 + $0x138] sm:$0xff] 0.0
          %337 = vst [vmem:[#allocation2 + $0x140] sm:$0xff] 0.0
          %338 = vst [vmem:[#allocation2 + $0x148] sm:$0xff] 0.0
          %339 = vst [vmem:[#allocation2 + $0x150] sm:$0xff] 0.0
          %340 = vst [vmem:[#allocation2 + $0x158] sm:$0xff] 0.0
          %341 = vst [vmem:[#allocation2 + $0x160] sm:$0xff] 0.0
          %342 = vst [vmem:[#allocation2 + $0x168] sm:$0xff] 0.0
          %343 = vst [vmem:[#allocation2 + $0x170] sm:$0xff] 0.0
          %344 = vst [vmem:[#allocation2 + $0x178] sm:$0xff] 0.0
          %345 = vst [vmem:[#allocation2 + $0x180] sm:$0xff] 0.0
          %346 = vst [vmem:[#allocation2 + $0x188] sm:$0xff] 0.0
          %347 = vst [vmem:[#allocation2 + $0x190] sm:$0xff] 0.0
          %348 = vst [vmem:[#allocation2 + $0x198] sm:$0xff] 0.0
          %349 = vst [vmem:[#allocation2 + $0x1a0] sm:$0xff] 0.0
          %350 = vst [vmem:[#allocation2 + $0x1a8] sm:$0xff] 0.0
          %351 = vst [vmem:[#allocation2 + $0x1b0] sm:$0xff] 0.0
          %352 = vst [vmem:[#allocation2 + $0x1b8] sm:$0xff] 0.0
          %353 = vst [vmem:[#allocation2 + $0x1c0] sm:$0xff] 0.0
          %354 = vst [vmem:[#allocation2 + $0x1c8] sm:$0xff] 0.0
          %355 = vst [vmem:[#allocation2 + $0x1d0] sm:$0xff] 0.0
          %356 = vst [vmem:[#allocation2 + $0x1d8] sm:$0xff] 0.0
          %357 = vst [vmem:[#allocation2 + $0x1e0] sm:$0xff] 0.0
          %358 = vst [vmem:[#allocation2 + $0x1e8] sm:$0xff] 0.0
          %359 = vst [vmem:[#allocation2 + $0x1f0] sm:$0xff] 0.0
          %360 = vst [vmem:[#allocation2 + $0x1f8] sm:$0xff] 0.0
          %361 = vst [vmem:[#allocation2 + $0x200] sm:$0xff] 0.0
          %362 = vst [vmem:[#allocation2 + $0x208] sm:$0xff] 0.0
          %363 = vst [vmem:[#allocation2 + $0x210] sm:$0xff] 0.0
          %364 = vst [vmem:[#allocation2 + $0x218] sm:$0xff] 0.0
          %365 = vst [vmem:[#allocation2 + $0x220] sm:$0xff] 0.0
          %366 = vst [vmem:[#allocation2 + $0x228] sm:$0xff] 0.0
          %367 = vst [vmem:[#allocation2 + $0x230] sm:$0xff] 0.0
          %368 = vst [vmem:[#allocation2 + $0x238] sm:$0xff] 0.0
          %369 = vst [vmem:[#allocation2 + $0x240] sm:$0xff] 0.0
          %370 = vst [vmem:[#allocation2 + $0x248] sm:$0xff] 0.0
          %371 = vst [vmem:[#allocation2 + $0x250] sm:$0xff] 0.0
          %372 = vst [vmem:[#allocation2 + $0x258] sm:$0xff] 0.0
          %373 = vst [vmem:[#allocation2 + $0x260] sm:$0xff] 0.0
          %374 = vst [vmem:[#allocation2 + $0x268] sm:$0xff] 0.0
          %375 = vst [vmem:[#allocation2 + $0x270] sm:$0xff] 0.0
          %376 = vst [vmem:[#allocation2 + $0x278] sm:$0xff] 0.0
          %377 = vst [vmem:[#allocation2 + $0x280] sm:$0xff] 0.0
          %378 = vst [vmem:[#allocation2 + $0x288] sm:$0xff] 0.0
          %379 = vst [vmem:[#allocation2 + $0x290] sm:$0xff] 0.0
          %380 = vst [vmem:[#allocation2 + $0x298] sm:$0xff] 0.0
          %381 = vst [vmem:[#allocation2 + $0x2a0] sm:$0xff] 0.0
          %382 = vst [vmem:[#allocation2 + $0x2a8] sm:$0xff] 0.0
          %383 = vst [vmem:[#allocation2 + $0x2b0] sm:$0xff] 0.0
          %384 = vst [vmem:[#allocation2 + $0x2b8] sm:$0xff] 0.0
          %385 = vst [vmem:[#allocation2 + $0x2c0] sm:$0xff] 0.0
          %386 = vst [vmem:[#allocation2 + $0x2c8] sm:$0xff] 0.0
          %387 = vst [vmem:[#allocation2 + $0x2d0] sm:$0xff] 0.0
          %388 = vst [vmem:[#allocation2 + $0x2d8] sm:$0xff] 0.0
          %389 = vst [vmem:[#allocation2 + $0x2e0] sm:$0xff] 0.0
          %390 = vst [vmem:[#allocation2 + $0x2e8] sm:$0xff] 0.0
          %391 = vst [vmem:[#allocation2 + $0x2f0] sm:$0xff] 0.0
          %392 = vst [vmem:[#allocation2 + $0x2f8] sm:$0xff] 0.0
          %393 = vst [vmem:[#allocation2 + $0x300] sm:$0xff] 0.0
          %394 = vst [vmem:[#allocation2 + $0x308] sm:$0xff] 0.0
          %395 = vst [vmem:[#allocation2 + $0x310] sm:$0xff] 0.0
          %396 = vst [vmem:[#allocation2 + $0x318] sm:$0xff] 0.0
          %397 = vst [vmem:[#allocation2 + $0x320] sm:$0xff] 0.0
          %398 = vst [vmem:[#allocation2 + $0x328] sm:$0xff] 0.0
          %399 = vst [vmem:[#allocation2 + $0x330] sm:$0xff] 0.0
          %400 = vst [vmem:[#allocation2 + $0x338] sm:$0xff] 0.0
          %401 = vst [vmem:[#allocation2 + $0x340] sm:$0xff] 0.0
          %402 = vst [vmem:[#allocation2 + $0x348] sm:$0xff] 0.0
          %403 = vst [vmem:[#allocation2 + $0x350] sm:$0xff] 0.0
          %404 = vst [vmem:[#allocation2 + $0x358] sm:$0xff] 0.0
          %405 = vst [vmem:[#allocation2 + $0x360] sm:$0xff] 0.0
          %406 = vst [vmem:[#allocation2 + $0x368] sm:$0xff] 0.0
          %407 = vst [vmem:[#allocation2 + $0x370] sm:$0xff] 0.0
          %408 = vst [vmem:[#allocation2 + $0x378] sm:$0xff] 0.0
          %409 = vst [vmem:[#allocation2 + $0x380] sm:$0xff] 0.0
          %410 = vst [vmem:[#allocation2 + $0x388] sm:$0xff] 0.0
          %411 = vst [vmem:[#allocation2 + $0x390] sm:$0xff] 0.0
          %412 = vst [vmem:[#allocation2 + $0x398] sm:$0xff] 0.0
          %413 = vst [vmem:[#allocation2 + $0x3a0] sm:$0xff] 0.0
          %414 = vst [vmem:[#allocation2 + $0x3a8] sm:$0xff] 0.0
          %415 = vst [vmem:[#allocation2 + $0x3b0] sm:$0xff] 0.0
          %416 = vst [vmem:[#allocation2 + $0x3b8] sm:$0xff] 0.0
          %417 = vst [vmem:[#allocation2 + $0x3c0] sm:$0xff] 0.0
          %418 = vst [vmem:[#allocation2 + $0x3c8] sm:$0xff] 0.0
          %419 = vst [vmem:[#allocation2 + $0x3d0] sm:$0xff] 0.0
          %420 = vst [vmem:[#allocation2 + $0x3d8] sm:$0xff] 0.0
          %421 = vst [vmem:[#allocation2 + $0x3e0] sm:$0xff] 0.0
          %422 = vst [vmem:[#allocation2 + $0x3e8] sm:$0xff] 0.0
          %423 = vst [vmem:[#allocation2 + $0x3f0] sm:$0xff] 0.0
          %424 = vst [vmem:[#allocation2 + $0x3f8] sm:$0xff] 0.0
        $region48: #{tpu_custom_call.1} parent=31 // pred_fallthru
          _
        %v425 = vld [vmem:[#allocation2] sm:$0xff]
        %v426 = vld [vmem:[#allocation2 + $0x8] sm:$0xff]
        %v427 = vld [vmem:[#allocation2 + $0x10] sm:$0xff]
        %v428 = vld [vmem:[#allocation2 + $0x18] sm:$0xff]
        %v429 = vld [vmem:[#allocation2 + $0x20] sm:$0xff]
        %v430 = vld [vmem:[#allocation2 + $0x28] sm:$0xff]
        %v431 = vld [vmem:[#allocation2 + $0x30] sm:$0xff]
        %v432 = vld [vmem:[#allocation2 + $0x38] sm:$0xff]
        %v433 = vld [vmem:[#allocation2 + $0x40] sm:$0xff]
        %v434 = vld [vmem:[#allocation2 + $0x48] sm:$0xff]
        %v435 = vld [vmem:[#allocation2 + $0x50] sm:$0xff]
        %v436 = vld [vmem:[#allocation2 + $0x58] sm:$0xff]
        %v437 = vld [vmem:[#allocation2 + $0x60] sm:$0xff]
        %v438 = vld [vmem:[#allocation2 + $0x68] sm:$0xff]
        %v439 = vld [vmem:[#allocation2 + $0x70] sm:$0xff]
        %v440 = vld [vmem:[#allocation2 + $0x78] sm:$0xff]
        %v441 = vld [vmem:[#allocation2 + $0x80] sm:$0xff]
        %v442 = vld [vmem:[#allocation2 + $0x88] sm:$0xff]
        %v443 = vld [vmem:[#allocation2 + $0x90] sm:$0xff]
        %v444 = vld [vmem:[#allocation2 + $0x98] sm:$0xff]
        %v445 = vld [vmem:[#allocation2 + $0xa0] sm:$0xff]
        %v446 = vld [vmem:[#allocation2 + $0xa8] sm:$0xff]
        %v447 = vld [vmem:[#allocation2 + $0xb0] sm:$0xff]
        %v448 = vld [vmem:[#allocation2 + $0xb8] sm:$0xff]
        %v449 = vld [vmem:[#allocation2 + $0xc0] sm:$0xff]
        %v450 = vld [vmem:[#allocation2 + $0xc8] sm:$0xff]
        %v451 = vld [vmem:[#allocation2 + $0xd0] sm:$0xff]
        %v452 = vld [vmem:[#allocation2 + $0xd8] sm:$0xff]
        %v453 = vld [vmem:[#allocation2 + $0xe0] sm:$0xff]
        %v454 = vld [vmem:[#allocation2 + $0xe8] sm:$0xff]
        %v455 = vld [vmem:[#allocation2 + $0xf0] sm:$0xff]
        %v456 = vld [vmem:[#allocation2 + $0xf8] sm:$0xff]
        %v457 = vld [vmem:[#allocation2 + $0x100] sm:$0xff]
        %v458 = vld [vmem:[#allocation2 + $0x108] sm:$0xff]
        %v459 = vld [vmem:[#allocation2 + $0x110] sm:$0xff]
        %v460 = vld [vmem:[#allocation2 + $0x118] sm:$0xff]
        %v461 = vld [vmem:[#allocation2 + $0x120] sm:$0xff]
        %v462 = vld [vmem:[#allocation2 + $0x128] sm:$0xff]
        %v463 = vld [vmem:[#allocation2 + $0x130] sm:$0xff]
        %v464 = vld [vmem:[#allocation2 + $0x138] sm:$0xff]
        %v465 = vld [vmem:[#allocation2 + $0x140] sm:$0xff]
        %v466 = vld [vmem:[#allocation2 + $0x148] sm:$0xff]
        %v467 = vld [vmem:[#allocation2 + $0x150] sm:$0xff]
        %v468 = vld [vmem:[#allocation2 + $0x158] sm:$0xff]
        %v469 = vld [vmem:[#allocation2 + $0x160] sm:$0xff]
        %v470 = vld [vmem:[#allocation2 + $0x168] sm:$0xff]
        %v471 = vld [vmem:[#allocation2 + $0x170] sm:$0xff]
        %v472 = vld [vmem:[#allocation2 + $0x178] sm:$0xff]
        %v473 = vld [vmem:[#allocation2 + $0x180] sm:$0xff]
        %v474 = vld [vmem:[#allocation2 + $0x188] sm:$0xff]
        %v475 = vld [vmem:[#allocation2 + $0x190] sm:$0xff]
        %v476 = vld [vmem:[#allocation2 + $0x198] sm:$0xff]
        %v477 = vld [vmem:[#allocation2 + $0x1a0] sm:$0xff]
        %v478 = vld [vmem:[#allocation2 + $0x1a8] sm:$0xff]
        %v479 = vld [vmem:[#allocation2 + $0x1b0] sm:$0xff]
        %v480 = vld [vmem:[#allocation2 + $0x1b8] sm:$0xff]
        %v481 = vld [vmem:[#allocation2 + $0x1c0] sm:$0xff]
        %v482 = vld [vmem:[#allocation2 + $0x1c8] sm:$0xff]
        %v483 = vld [vmem:[#allocation2 + $0x1d0] sm:$0xff]
        %v484 = vld [vmem:[#allocation2 + $0x1d8] sm:$0xff]
        %v485 = vld [vmem:[#allocation2 + $0x1e0] sm:$0xff]
        %v486 = vld [vmem:[#allocation2 + $0x1e8] sm:$0xff]
        %v487 = vld [vmem:[#allocation2 + $0x1f0] sm:$0xff]
        %v488 = vld [vmem:[#allocation2 + $0x1f8] sm:$0xff]
        %v489 = vld [vmem:[#allocation2 + $0x200] sm:$0xff]
        %v490 = vld [vmem:[#allocation2 + $0x208] sm:$0xff]
        %v491 = vld [vmem:[#allocation2 + $0x210] sm:$0xff]
        %v492 = vld [vmem:[#allocation2 + $0x218] sm:$0xff]
        %v493 = vld [vmem:[#allocation2 + $0x220] sm:$0xff]
        %v494 = vld [vmem:[#allocation2 + $0x228] sm:$0xff]
        %v495 = vld [vmem:[#allocation2 + $0x230] sm:$0xff]
        %v496 = vld [vmem:[#allocation2 + $0x238] sm:$0xff]
        %v497 = vld [vmem:[#allocation2 + $0x240] sm:$0xff]
        %v498 = vld [vmem:[#allocation2 + $0x248] sm:$0xff]
        %v499 = vld [vmem:[#allocation2 + $0x250] sm:$0xff]
        %v500 = vld [vmem:[#allocation2 + $0x258] sm:$0xff]
        %v501 = vld [vmem:[#allocation2 + $0x260] sm:$0xff]
        %v502 = vld [vmem:[#allocation2 + $0x268] sm:$0xff]
        %v503 = vld [vmem:[#allocation2 + $0x270] sm:$0xff]
        %v504 = vld [vmem:[#allocation2 + $0x278] sm:$0xff]
        %v505 = vld [vmem:[#allocation2 + $0x280] sm:$0xff]
        %v506 = vld [vmem:[#allocation2 + $0x288] sm:$0xff]
        %v507 = vld [vmem:[#allocation2 + $0x290] sm:$0xff]
        %v508 = vld [vmem:[#allocation2 + $0x298] sm:$0xff]
        %v509 = vld [vmem:[#allocation2 + $0x2a0] sm:$0xff]
        %v510 = vld [vmem:[#allocation2 + $0x2a8] sm:$0xff]
        %v511 = vld [vmem:[#allocation2 + $0x2b0] sm:$0xff]
        %v512 = vld [vmem:[#allocation2 + $0x2b8] sm:$0xff]
        %v513 = vld [vmem:[#allocation2 + $0x2c0] sm:$0xff]
        %v514 = vld [vmem:[#allocation2 + $0x2c8] sm:$0xff]
        %v515 = vld [vmem:[#allocation2 + $0x2d0] sm:$0xff]
        %v516 = vld [vmem:[#allocation2 + $0x2d8] sm:$0xff]
        %v517 = vld [vmem:[#allocation2 + $0x2e0] sm:$0xff]
        %v518 = vld [vmem:[#allocation2 + $0x2e8] sm:$0xff]
        %v519 = vld [vmem:[#allocation2 + $0x2f0] sm:$0xff]
        %v520 = vld [vmem:[#allocation2 + $0x2f8] sm:$0xff]
        %v521 = vld [vmem:[#allocation2 + $0x300] sm:$0xff]
        %v522 = vld [vmem:[#allocation2 + $0x308] sm:$0xff]
        %v523 = vld [vmem:[#allocation2 + $0x310] sm:$0xff]
        %v524 = vld [vmem:[#allocation2 + $0x318] sm:$0xff]
        %v525 = vld [vmem:[#allocation2 + $0x320] sm:$0xff]
        %v526 = vld [vmem:[#allocation2 + $0x328] sm:$0xff]
        %v527 = vld [vmem:[#allocation2 + $0x330] sm:$0xff]
        %v528 = vld [vmem:[#allocation2 + $0x338] sm:$0xff]
        %v529 = vld [vmem:[#allocation2 + $0x340] sm:$0xff]
        %v530 = vld [vmem:[#allocation2 + $0x348] sm:$0xff]
        %v531 = vld [vmem:[#allocation2 + $0x350] sm:$0xff]
        %v532 = vld [vmem:[#allocation2 + $0x358] sm:$0xff]
        %v533 = vld [vmem:[#allocation2 + $0x360] sm:$0xff]
        %v534 = vld [vmem:[#allocation2 + $0x368] sm:$0xff]
        %v535 = vld [vmem:[#allocation2 + $0x370] sm:$0xff]
        %v536 = vld [vmem:[#allocation2 + $0x378] sm:$0xff]
        %v537 = vld [vmem:[#allocation2 + $0x380] sm:$0xff]
        %v538 = vld [vmem:[#allocation2 + $0x388] sm:$0xff]
        %v539 = vld [vmem:[#allocation2 + $0x390] sm:$0xff]
        %v540 = vld [vmem:[#allocation2 + $0x398] sm:$0xff]
        %v541 = vld [vmem:[#allocation2 + $0x3a0] sm:$0xff]
        %v542 = vld [vmem:[#allocation2 + $0x3a8] sm:$0xff]
        %v543 = vld [vmem:[#allocation2 + $0x3b0] sm:$0xff]
        %v544 = vld [vmem:[#allocation2 + $0x3b8] sm:$0xff]
        %v545 = vld [vmem:[#allocation2 + $0x3c0] sm:$0xff]
        %v546 = vld [vmem:[#allocation2 + $0x3c8] sm:$0xff]
        %v547 = vld [vmem:[#allocation2 + $0x3d0] sm:$0xff]
        %v548 = vld [vmem:[#allocation2 + $0x3d8] sm:$0xff]
        %v549 = vld [vmem:[#allocation2 + $0x3e0] sm:$0xff]
        %v550 = vld [vmem:[#allocation2 + $0x3e8] sm:$0xff]
        %v551 = vld [vmem:[#allocation2 + $0x3f0] sm:$0xff]
        %v552 = vld [vmem:[#allocation2 + $0x3f8] sm:$0xff]
        %v553 = vld [vmem:[%s242] sm:$0xff]
        %v554 = vld [vmem:[%s242 + $0x8] sm:$0xff]
        %v555 = vld [vmem:[%s242 + $0x10] sm:$0xff]
        %v556 = vld [vmem:[%s242 + $0x18] sm:$0xff]
        %v557 = vld [vmem:[%s242 + $0x20] sm:$0xff]
        %v558 = vld [vmem:[%s242 + $0x28] sm:$0xff]
        %v559 = vld [vmem:[%s242 + $0x30] sm:$0xff]
        %v560 = vld [vmem:[%s242 + $0x38] sm:$0xff]
        %v561 = vld [vmem:[%s242 + $0x40] sm:$0xff]
        %v562 = vld [vmem:[%s242 + $0x48] sm:$0xff]
        %v563 = vld [vmem:[%s242 + $0x50] sm:$0xff]
        %v564 = vld [vmem:[%s242 + $0x58] sm:$0xff]
        %v565 = vld [vmem:[%s242 + $0x60] sm:$0xff]
        %v566 = vld [vmem:[%s242 + $0x68] sm:$0xff]
        %v567 = vld [vmem:[%s242 + $0x70] sm:$0xff]
        %v568 = vld [vmem:[%s242 + $0x78] sm:$0xff]
        %v569 = vld [vmem:[%s242 + $0x80] sm:$0xff]
        %v570 = vld [vmem:[%s242 + $0x88] sm:$0xff]
        %v571 = vld [vmem:[%s242 + $0x90] sm:$0xff]
        %v572 = vld [vmem:[%s242 + $0x98] sm:$0xff]
        %v573 = vld [vmem:[%s242 + $0xa0] sm:$0xff]
        %v574 = vld [vmem:[%s242 + $0xa8] sm:$0xff]
        %v575 = vld [vmem:[%s242 + $0xb0] sm:$0xff]
        %v576 = vld [vmem:[%s242 + $0xb8] sm:$0xff]
        %v577 = vld [vmem:[%s242 + $0xc0] sm:$0xff]
        %v578 = vld [vmem:[%s242 + $0xc8] sm:$0xff]
        %v579 = vld [vmem:[%s242 + $0xd0] sm:$0xff]
        %v580 = vld [vmem:[%s242 + $0xd8] sm:$0xff]
        %v581 = vld [vmem:[%s242 + $0xe0] sm:$0xff]
        %v582 = vld [vmem:[%s242 + $0xe8] sm:$0xff]
        %v583 = vld [vmem:[%s242 + $0xf0] sm:$0xff]
        %v584 = vld [vmem:[%s242 + $0xf8] sm:$0xff]
        %v585 = vld [vmem:[%s242 + $0x100] sm:$0xff]
        %v586 = vld [vmem:[%s242 + $0x108] sm:$0xff]
        %v587 = vld [vmem:[%s242 + $0x110] sm:$0xff]
        %v588 = vld [vmem:[%s242 + $0x118] sm:$0xff]
        %v589 = vld [vmem:[%s242 + $0x120] sm:$0xff]
        %v590 = vld [vmem:[%s242 + $0x128] sm:$0xff]
        %v591 = vld [vmem:[%s242 + $0x130] sm:$0xff]
        %v592 = vld [vmem:[%s242 + $0x138] sm:$0xff]
        %v593 = vld [vmem:[%s242 + $0x140] sm:$0xff]
        %v594 = vld [vmem:[%s242 + $0x148] sm:$0xff]
        %v595 = vld [vmem:[%s242 + $0x150] sm:$0xff]
        %v596 = vld [vmem:[%s242 + $0x158] sm:$0xff]
        %v597 = vld [vmem:[%s242 + $0x160] sm:$0xff]
        %v598 = vld [vmem:[%s242 + $0x168] sm:$0xff]
        %v599 = vld [vmem:[%s242 + $0x170] sm:$0xff]
        %v600 = vld [vmem:[%s242 + $0x178] sm:$0xff]
        %v601 = vld [vmem:[%s242 + $0x180] sm:$0xff]
        %v602 = vld [vmem:[%s242 + $0x188] sm:$0xff]
        %v603 = vld [vmem:[%s242 + $0x190] sm:$0xff]
        %v604 = vld [vmem:[%s242 + $0x198] sm:$0xff]
        %v605 = vld [vmem:[%s242 + $0x1a0] sm:$0xff]
        %v606 = vld [vmem:[%s242 + $0x1a8] sm:$0xff]
        %v607 = vld [vmem:[%s242 + $0x1b0] sm:$0xff]
        %v608 = vld [vmem:[%s242 + $0x1b8] sm:$0xff]
        %v609 = vld [vmem:[%s242 + $0x1c0] sm:$0xff]
        %v610 = vld [vmem:[%s242 + $0x1c8] sm:$0xff]
        %v611 = vld [vmem:[%s242 + $0x1d0] sm:$0xff]
        %v612 = vld [vmem:[%s242 + $0x1d8] sm:$0xff]
        %v613 = vld [vmem:[%s242 + $0x1e0] sm:$0xff]
        %v614 = vld [vmem:[%s242 + $0x1e8] sm:$0xff]
        %v615 = vld [vmem:[%s242 + $0x1f0] sm:$0xff]
        %v616 = vld [vmem:[%s242 + $0x1f8] sm:$0xff]
        %v617 = vld [vmem:[%s242 + $0x200] sm:$0xff]
        %v618 = vld [vmem:[%s242 + $0x208] sm:$0xff]
        %v619 = vld [vmem:[%s242 + $0x210] sm:$0xff]
        %v620 = vld [vmem:[%s242 + $0x218] sm:$0xff]
        %v621 = vld [vmem:[%s242 + $0x220] sm:$0xff]
        %v622 = vld [vmem:[%s242 + $0x228] sm:$0xff]
        %v623 = vld [vmem:[%s242 + $0x230] sm:$0xff]
        %v624 = vld [vmem:[%s242 + $0x238] sm:$0xff]
        %v625 = vld [vmem:[%s242 + $0x240] sm:$0xff]
        %v626 = vld [vmem:[%s242 + $0x248] sm:$0xff]
        %v627 = vld [vmem:[%s242 + $0x250] sm:$0xff]
        %v628 = vld [vmem:[%s242 + $0x258] sm:$0xff]
        %v629 = vld [vmem:[%s242 + $0x260] sm:$0xff]
        %v630 = vld [vmem:[%s242 + $0x268] sm:$0xff]
        %v631 = vld [vmem:[%s242 + $0x270] sm:$0xff]
        %v632 = vld [vmem:[%s242 + $0x278] sm:$0xff]
        %v633 = vld [vmem:[%s242 + $0x280] sm:$0xff]
        %v634 = vld [vmem:[%s242 + $0x288] sm:$0xff]
        %v635 = vld [vmem:[%s242 + $0x290] sm:$0xff]
        %v636 = vld [vmem:[%s242 + $0x298] sm:$0xff]
        %v637 = vld [vmem:[%s242 + $0x2a0] sm:$0xff]
        %v638 = vld [vmem:[%s242 + $0x2a8] sm:$0xff]
        %v639 = vld [vmem:[%s242 + $0x2b0] sm:$0xff]
        %v640 = vld [vmem:[%s242 + $0x2b8] sm:$0xff]
        %v641 = vld [vmem:[%s242 + $0x2c0] sm:$0xff]
        %v642 = vld [vmem:[%s242 + $0x2c8] sm:$0xff]
        %v643 = vld [vmem:[%s242 + $0x2d0] sm:$0xff]
        %v644 = vld [vmem:[%s242 + $0x2d8] sm:$0xff]
        %v645 = vld [vmem:[%s242 + $0x2e0] sm:$0xff]
        %v646 = vld [vmem:[%s242 + $0x2e8] sm:$0xff]
        %v647 = vld [vmem:[%s242 + $0x2f0] sm:$0xff]
        %v648 = vld [vmem:[%s242 + $0x2f8] sm:$0xff]
        %v649 = vld [vmem:[%s242 + $0x300] sm:$0xff]
        %v650 = vld [vmem:[%s242 + $0x308] sm:$0xff]
        %v651 = vld [vmem:[%s242 + $0x310] sm:$0xff]
        %v652 = vld [vmem:[%s242 + $0x318] sm:$0xff]
        %v653 = vld [vmem:[%s242 + $0x320] sm:$0xff]
        %v654 = vld [vmem:[%s242 + $0x328] sm:$0xff]
        %v655 = vld [vmem:[%s242 + $0x330] sm:$0xff]
        %v656 = vld [vmem:[%s242 + $0x338] sm:$0xff]
        %v657 = vld [vmem:[%s242 + $0x340] sm:$0xff]
        %v658 = vld [vmem:[%s242 + $0x348] sm:$0xff]
        %v659 = vld [vmem:[%s242 + $0x350] sm:$0xff]
        %v660 = vld [vmem:[%s242 + $0x358] sm:$0xff]
        %v661 = vld [vmem:[%s242 + $0x360] sm:$0xff]
        %v662 = vld [vmem:[%s242 + $0x368] sm:$0xff]
        %v663 = vld [vmem:[%s242 + $0x370] sm:$0xff]
        %v664 = vld [vmem:[%s242 + $0x378] sm:$0xff]
        %v665 = vld [vmem:[%s242 + $0x380] sm:$0xff]
        %v666 = vld [vmem:[%s242 + $0x388] sm:$0xff]
        %v667 = vld [vmem:[%s242 + $0x390] sm:$0xff]
        %v668 = vld [vmem:[%s242 + $0x398] sm:$0xff]
        %v669 = vld [vmem:[%s242 + $0x3a0] sm:$0xff]
        %v670 = vld [vmem:[%s242 + $0x3a8] sm:$0xff]
        %v671 = vld [vmem:[%s242 + $0x3b0] sm:$0xff]
        %v672 = vld [vmem:[%s242 + $0x3b8] sm:$0xff]
        %v673 = vld [vmem:[%s242 + $0x3c0] sm:$0xff]
        %v674 = vld [vmem:[%s242 + $0x3c8] sm:$0xff]
        %v675 = vld [vmem:[%s242 + $0x3d0] sm:$0xff]
        %v676 = vld [vmem:[%s242 + $0x3d8] sm:$0xff]
        %v677 = vld [vmem:[%s242 + $0x3e0] sm:$0xff]
        %v678 = vld [vmem:[%s242 + $0x3e8] sm:$0xff]
        %v679 = vld [vmem:[%s242 + $0x3f0] sm:$0xff]
        %v680 = vld [vmem:[%s242 + $0x3f8] sm:$0xff]
        %v681 = vld [vmem:[#allocation6] sm:$0xff]
        %v682 = vld [vmem:[#allocation6 + $0x8] sm:$0xff]
        %v683 = vld [vmem:[#allocation6 + $0x10] sm:$0xff]
        %v684 = vld [vmem:[#allocation6 + $0x18] sm:$0xff]
        %v685 = vld [vmem:[#allocation6 + $0x20] sm:$0xff]
        %v686 = vld [vmem:[#allocation6 + $0x28] sm:$0xff]
        %v687 = vld [vmem:[#allocation6 + $0x30] sm:$0xff]
        %v688 = vld [vmem:[#allocation6 + $0x38] sm:$0xff]
        %v689 = vld [vmem:[#allocation6 + $0x40] sm:$0xff]
        %v690 = vld [vmem:[#allocation6 + $0x48] sm:$0xff]
        %v691 = vld [vmem:[#allocation6 + $0x50] sm:$0xff]
        %v692 = vld [vmem:[#allocation6 + $0x58] sm:$0xff]
        %v693 = vld [vmem:[#allocation6 + $0x60] sm:$0xff]
        %v694 = vld [vmem:[#allocation6 + $0x68] sm:$0xff]
        %v695 = vld [vmem:[#allocation6 + $0x70] sm:$0xff]
        %v696 = vld [vmem:[#allocation6 + $0x78] sm:$0xff]
        %v697 = vld [vmem:[#allocation6 + $0x80] sm:$0xff]
        %v698 = vld [vmem:[#allocation6 + $0x88] sm:$0xff]
        %v699 = vld [vmem:[#allocation6 + $0x90] sm:$0xff]
        %v700 = vld [vmem:[#allocation6 + $0x98] sm:$0xff]
        %v701 = vld [vmem:[#allocation6 + $0xa0] sm:$0xff]
        %v702 = vld [vmem:[#allocation6 + $0xa8] sm:$0xff]
        %v703 = vld [vmem:[#allocation6 + $0xb0] sm:$0xff]
        %v704 = vld [vmem:[#allocation6 + $0xb8] sm:$0xff]
        %v705 = vld [vmem:[#allocation6 + $0xc0] sm:$0xff]
        %v706 = vld [vmem:[#allocation6 + $0xc8] sm:$0xff]
        %v707 = vld [vmem:[#allocation6 + $0xd0] sm:$0xff]
        %v708 = vld [vmem:[#allocation6 + $0xd8] sm:$0xff]
        %v709 = vld [vmem:[#allocation6 + $0xe0] sm:$0xff]
        %v710 = vld [vmem:[#allocation6 + $0xe8] sm:$0xff]
        %v711 = vld [vmem:[#allocation6 + $0xf0] sm:$0xff]
        %v712 = vld [vmem:[#allocation6 + $0xf8] sm:$0xff]
        %v713 = vld [vmem:[#allocation6 + $0x100] sm:$0xff]
        %v714 = vld [vmem:[#allocation6 + $0x108] sm:$0xff]
        %v715 = vld [vmem:[#allocation6 + $0x110] sm:$0xff]
        %v716 = vld [vmem:[#allocation6 + $0x118] sm:$0xff]
        %v717 = vld [vmem:[#allocation6 + $0x120] sm:$0xff]
        %v718 = vld [vmem:[#allocation6 + $0x128] sm:$0xff]
        %v719 = vld [vmem:[#allocation6 + $0x130] sm:$0xff]
        %v720 = vld [vmem:[#allocation6 + $0x138] sm:$0xff]
        %v721 = vld [vmem:[#allocation6 + $0x140] sm:$0xff]
        %v722 = vld [vmem:[#allocation6 + $0x148] sm:$0xff]
        %v723 = vld [vmem:[#allocation6 + $0x150] sm:$0xff]
        %v724 = vld [vmem:[#allocation6 + $0x158] sm:$0xff]
        %v725 = vld [vmem:[#allocation6 + $0x160] sm:$0xff]
        %v726 = vld [vmem:[#allocation6 + $0x168] sm:$0xff]
        %v727 = vld [vmem:[#allocation6 + $0x170] sm:$0xff]
        %v728 = vld [vmem:[#allocation6 + $0x178] sm:$0xff]
        %v729 = vld [vmem:[#allocation6 + $0x180] sm:$0xff]
        %v730 = vld [vmem:[#allocation6 + $0x188] sm:$0xff]
        %v731 = vld [vmem:[#allocation6 + $0x190] sm:$0xff]
        %v732 = vld [vmem:[#allocation6 + $0x198] sm:$0xff]
        %v733 = vld [vmem:[#allocation6 + $0x1a0] sm:$0xff]
        %v734 = vld [vmem:[#allocation6 + $0x1a8] sm:$0xff]
        %v735 = vld [vmem:[#allocation6 + $0x1b0] sm:$0xff]
        %v736 = vld [vmem:[#allocation6 + $0x1b8] sm:$0xff]
        %v737 = vld [vmem:[#allocation6 + $0x1c0] sm:$0xff]
        %v738 = vld [vmem:[#allocation6 + $0x1c8] sm:$0xff]
        %v739 = vld [vmem:[#allocation6 + $0x1d0] sm:$0xff]
        %v740 = vld [vmem:[#allocation6 + $0x1d8] sm:$0xff]
        %v741 = vld [vmem:[#allocation6 + $0x1e0] sm:$0xff]
        %v742 = vld [vmem:[#allocation6 + $0x1e8] sm:$0xff]
        %v743 = vld [vmem:[#allocation6 + $0x1f0] sm:$0xff]
        %v744 = vld [vmem:[#allocation6 + $0x1f8] sm:$0xff]
        %745 = vmatpush.msra.mxu0 %v711
        %746 = vmatpush.msra.mxu0 %v709
        %747 = vmatpush.msra.mxu0 %v707
        %748 = vmatpush.msra.mxu0 %v705
        %749 = vmatpush.msra.mxu0 %v703
        %750 = vmatpush.msra.mxu0 %v701
        %751 = vmatpush.msra.mxu0 %v699
        %752 = vmatpush.msra.mxu0 %v697
        %753 = vmatpush.msra.mxu0 %v695
        %754 = vmatpush.msra.mxu0 %v693
        %755 = vmatpush.msra.mxu0 %v691
        %756 = vmatpush.msra.mxu0 %v689
        %757 = vmatpush.msra.mxu0 %v687
        %758 = vmatpush.msra.mxu0 %v685
        %759 = vmatpush.msra.mxu0 %v683
        %760 = vmatpush.msra.mxu0 %v681
        %761 = vmatmul.f32.gmra.mxu0 %v553
        %v762 = vpop.f32.mrf.mxu0
        %v763 = vadd.f32 0.0, %v762
        %764 = vmatmul.f32.gmra.mxu0 %v555
        %v765 = vpop.f32.mrf.mxu0
        %v766 = vadd.f32 0.0, %v765
        %767 = vmatmul.f32.gmra.mxu0 %v557
        %v768 = vpop.f32.mrf.mxu0
        %v769 = vadd.f32 0.0, %v768
        %770 = vmatmul.f32.gmra.mxu0 %v559
        %v771 = vpop.f32.mrf.mxu0
        %v772 = vadd.f32 0.0, %v771
        %773 = vmatmul.f32.gmra.mxu0 %v561
        %v774 = vpop.f32.mrf.mxu0
        %v775 = vadd.f32 0.0, %v774
        %776 = vmatmul.f32.gmra.mxu0 %v563
        %v777 = vpop.f32.mrf.mxu0
        %v778 = vadd.f32 0.0, %v777
        %779 = vmatmul.f32.gmra.mxu0 %v565
        %v780 = vpop.f32.mrf.mxu0
        %v781 = vadd.f32 0.0, %v780
        %782 = vmatmul.f32.gmra.mxu0 %v567
        %v783 = vpop.f32.mrf.mxu0
        %v784 = vadd.f32 0.0, %v783
        %785 = vmatmul.f32.gmra.mxu0 %v569
        %v786 = vpop.f32.mrf.mxu0
        %v787 = vadd.f32 0.0, %v786
        %788 = vmatmul.f32.gmra.mxu0 %v571
        %v789 = vpop.f32.mrf.mxu0
        %v790 = vadd.f32 0.0, %v789
        %791 = vmatmul.f32.gmra.mxu0 %v573
        %v792 = vpop.f32.mrf.mxu0
        %v793 = vadd.f32 0.0, %v792
        %794 = vmatmul.f32.gmra.mxu0 %v575
        %v795 = vpop.f32.mrf.mxu0
        %v796 = vadd.f32 0.0, %v795
        %797 = vmatmul.f32.gmra.mxu0 %v577
        %v798 = vpop.f32.mrf.mxu0
        %v799 = vadd.f32 0.0, %v798
        %800 = vmatmul.f32.gmra.mxu0 %v579
        %v801 = vpop.f32.mrf.mxu0
        %v802 = vadd.f32 0.0, %v801
        %803 = vmatmul.f32.gmra.mxu0 %v581
        %v804 = vpop.f32.mrf.mxu0
        %v805 = vadd.f32 0.0, %v804
        %806 = vmatmul.f32.gmra.mxu0 %v583
        %v807 = vpop.f32.mrf.mxu0
        %v808 = vadd.f32 0.0, %v807
        %809 = vmatmul.f32.gmra.mxu0 %v585
        %v810 = vpop.f32.mrf.mxu0
        %v811 = vadd.f32 0.0, %v810
        %812 = vmatmul.f32.gmra.mxu0 %v587
        %v813 = vpop.f32.mrf.mxu0
        %v814 = vadd.f32 0.0, %v813
        %815 = vmatmul.f32.gmra.mxu0 %v589
        %v816 = vpop.f32.mrf.mxu0
        %v817 = vadd.f32 0.0, %v816
        %818 = vmatmul.f32.gmra.mxu0 %v591
        %v819 = vpop.f32.mrf.mxu0
        %v820 = vadd.f32 0.0, %v819
        %821 = vmatmul.f32.gmra.mxu0 %v593
        %v822 = vpop.f32.mrf.mxu0
        %v823 = vadd.f32 0.0, %v822
        %824 = vmatmul.f32.gmra.mxu0 %v595
        %v825 = vpop.f32.mrf.mxu0
        %v826 = vadd.f32 0.0, %v825
        %827 = vmatmul.f32.gmra.mxu0 %v597
        %v828 = vpop.f32.mrf.mxu0
        %v829 = vadd.f32 0.0, %v828
        %830 = vmatmul.f32.gmra.mxu0 %v599
        %v831 = vpop.f32.mrf.mxu0
        %v832 = vadd.f32 0.0, %v831
        %833 = vmatmul.f32.gmra.mxu0 %v601
        %v834 = vpop.f32.mrf.mxu0
        %v835 = vadd.f32 0.0, %v834
        %836 = vmatmul.f32.gmra.mxu0 %v603
        %v837 = vpop.f32.mrf.mxu0
        %v838 = vadd.f32 0.0, %v837
        %839 = vmatmul.f32.gmra.mxu0 %v605
        %v840 = vpop.f32.mrf.mxu0
        %v841 = vadd.f32 0.0, %v840
        %842 = vmatmul.f32.gmra.mxu0 %v607
        %v843 = vpop.f32.mrf.mxu0
        %v844 = vadd.f32 0.0, %v843
        %845 = vmatmul.f32.gmra.mxu0 %v609
        %v846 = vpop.f32.mrf.mxu0
        %v847 = vadd.f32 0.0, %v846
        %848 = vmatmul.f32.gmra.mxu0 %v611
        %v849 = vpop.f32.mrf.mxu0
        %v850 = vadd.f32 0.0, %v849
        %851 = vmatmul.f32.gmra.mxu0 %v613
        %v852 = vpop.f32.mrf.mxu0
        %v853 = vadd.f32 0.0, %v852
        %854 = vmatmul.f32.gmra.mxu0 %v615
        %v855 = vpop.f32.mrf.mxu0
        %v856 = vadd.f32 0.0, %v855
        %857 = vmatmul.f32.gmra.mxu0 %v617
        %v858 = vpop.f32.mrf.mxu0
        %v859 = vadd.f32 0.0, %v858
        %860 = vmatmul.f32.gmra.mxu0 %v619
        %v861 = vpop.f32.mrf.mxu0
        %v862 = vadd.f32 0.0, %v861
        %863 = vmatmul.f32.gmra.mxu0 %v621
        %v864 = vpop.f32.mrf.mxu0
        %v865 = vadd.f32 0.0, %v864
        %866 = vmatmul.f32.gmra.mxu0 %v623
        %v867 = vpop.f32.mrf.mxu0
        %v868 = vadd.f32 0.0, %v867
        %869 = vmatmul.f32.gmra.mxu0 %v625
        %v870 = vpop.f32.mrf.mxu0
        %v871 = vadd.f32 0.0, %v870
        %872 = vmatmul.f32.gmra.mxu0 %v627
        %v873 = vpop.f32.mrf.mxu0
        %v874 = vadd.f32 0.0, %v873
        %875 = vmatmul.f32.gmra.mxu0 %v629
        %v876 = vpop.f32.mrf.mxu0
        %v877 = vadd.f32 0.0, %v876
        %878 = vmatmul.f32.gmra.mxu0 %v631
        %v879 = vpop.f32.mrf.mxu0
        %v880 = vadd.f32 0.0, %v879
        %881 = vmatmul.f32.gmra.mxu0 %v633
        %v882 = vpop.f32.mrf.mxu0
        %v883 = vadd.f32 0.0, %v882
        %884 = vmatmul.f32.gmra.mxu0 %v635
        %v885 = vpop.f32.mrf.mxu0
        %v886 = vadd.f32 0.0, %v885
        %887 = vmatmul.f32.gmra.mxu0 %v637
        %v888 = vpop.f32.mrf.mxu0
        %v889 = vadd.f32 0.0, %v888
        %890 = vmatmul.f32.gmra.mxu0 %v639
        %v891 = vpop.f32.mrf.mxu0
        %v892 = vadd.f32 0.0, %v891
        %893 = vmatmul.f32.gmra.mxu0 %v641
        %v894 = vpop.f32.mrf.mxu0
        %v895 = vadd.f32 0.0, %v894
        %896 = vmatmul.f32.gmra.mxu0 %v643
        %v897 = vpop.f32.mrf.mxu0
        %v898 = vadd.f32 0.0, %v897
        %899 = vmatmul.f32.gmra.mxu0 %v645
        %v900 = vpop.f32.mrf.mxu0
        %v901 = vadd.f32 0.0, %v900
        %902 = vmatmul.f32.gmra.mxu0 %v647
        %v903 = vpop.f32.mrf.mxu0
        %v904 = vadd.f32 0.0, %v903
        %905 = vmatmul.f32.gmra.mxu0 %v649
        %v906 = vpop.f32.mrf.mxu0
        %v907 = vadd.f32 0.0, %v906
        %908 = vmatmul.f32.gmra.mxu0 %v651
        %v909 = vpop.f32.mrf.mxu0
        %v910 = vadd.f32 0.0, %v909
        %911 = vmatmul.f32.gmra.mxu0 %v653
        %v912 = vpop.f32.mrf.mxu0
        %v913 = vadd.f32 0.0, %v912
        %914 = vmatmul.f32.gmra.mxu0 %v655
        %v915 = vpop.f32.mrf.mxu0
        %v916 = vadd.f32 0.0, %v915
        %917 = vmatmul.f32.gmra.mxu0 %v657
        %v918 = vpop.f32.mrf.mxu0
        %v919 = vadd.f32 0.0, %v918
        %920 = vmatmul.f32.gmra.mxu0 %v659
        %v921 = vpop.f32.mrf.mxu0
        %v922 = vadd.f32 0.0, %v921
        %923 = vmatmul.f32.gmra.mxu0 %v661
        %v924 = vpop.f32.mrf.mxu0
        %v925 = vadd.f32 0.0, %v924
        %926 = vmatmul.f32.gmra.mxu0 %v663
        %v927 = vpop.f32.mrf.mxu0
        %v928 = vadd.f32 0.0, %v927
        %929 = vmatmul.f32.gmra.mxu0 %v665
        %v930 = vpop.f32.mrf.mxu0
        %v931 = vadd.f32 0.0, %v930
        %932 = vmatmul.f32.gmra.mxu0 %v667
        %v933 = vpop.f32.mrf.mxu0
        %v934 = vadd.f32 0.0, %v933
        %935 = vmatmul.f32.gmra.mxu0 %v669
        %v936 = vpop.f32.mrf.mxu0
        %v937 = vadd.f32 0.0, %v936
        %938 = vmatmul.f32.gmra.mxu0 %v671
        %v939 = vpop.f32.mrf.mxu0
        %v940 = vadd.f32 0.0, %v939
        %941 = vmatmul.f32.gmra.mxu0 %v673
        %v942 = vpop.f32.mrf.mxu0
        %v943 = vadd.f32 0.0, %v942
        %944 = vmatmul.f32.gmra.mxu0 %v675
        %v945 = vpop.f32.mrf.mxu0
        %v946 = vadd.f32 0.0, %v945
        %947 = vmatmul.f32.gmra.mxu0 %v677
        %v948 = vpop.f32.mrf.mxu0
        %v949 = vadd.f32 0.0, %v948
        %950 = vmatmul.f32.gmra.mxu0 %v679
        %v951 = vpop.f32.mrf.mxu0
        %v952 = vadd.f32 0.0, %v951
        %953 = vdwg.mxu0
        %954 = vmatpush.msra.mxu0 %v743
        %955 = vmatpush.msra.mxu0 %v741
        %956 = vmatpush.msra.mxu0 %v739
        %957 = vmatpush.msra.mxu0 %v737
        %958 = vmatpush.msra.mxu0 %v735
        %959 = vmatpush.msra.mxu0 %v733
        %960 = vmatpush.msra.mxu0 %v731
        %961 = vmatpush.msra.mxu0 %v729
        %962 = vmatpush.msra.mxu0 %v727
        %963 = vmatpush.msra.mxu0 %v725
        %964 = vmatpush.msra.mxu0 %v723
        %965 = vmatpush.msra.mxu0 %v721
        %966 = vmatpush.msra.mxu0 %v719
        %967 = vmatpush.msra.mxu0 %v717
        %968 = vmatpush.msra.mxu0 %v715
        %969 = vmatpush.msra.mxu0 %v713
        %970 = vmatmul.f32.gmra.mxu0 %v554
        %v971 = vpop.f32.mrf.mxu0
        %v972 = vadd.f32 %v763, %v971
        %973 = vmatmul.f32.gmra.mxu0 %v556
        %v974 = vpop.f32.mrf.mxu0
        %v975 = vadd.f32 %v766, %v974
        %976 = vmatmul.f32.gmra.mxu0 %v558
        %v977 = vpop.f32.mrf.mxu0
        %v978 = vadd.f32 %v769, %v977
        %979 = vmatmul.f32.gmra.mxu0 %v560
        %v980 = vpop.f32.mrf.mxu0
        %v981 = vadd.f32 %v772, %v980
        %982 = vmatmul.f32.gmra.mxu0 %v562
        %v983 = vpop.f32.mrf.mxu0
        %v984 = vadd.f32 %v775, %v983
        %985 = vmatmul.f32.gmra.mxu0 %v564
        %v986 = vpop.f32.mrf.mxu0
        %v987 = vadd.f32 %v778, %v986
        %988 = vmatmul.f32.gmra.mxu0 %v566
        %v989 = vpop.f32.mrf.mxu0
        %v990 = vadd.f32 %v781, %v989
        %991 = vmatmul.f32.gmra.mxu0 %v568
        %v992 = vpop.f32.mrf.mxu0
        %v993 = vadd.f32 %v784, %v992
        %994 = vmatmul.f32.gmra.mxu0 %v570
        %v995 = vpop.f32.mrf.mxu0
        %v996 = vadd.f32 %v787, %v995
        %997 = vmatmul.f32.gmra.mxu0 %v572
        %v998 = vpop.f32.mrf.mxu0
        %v999 = vadd.f32 %v790, %v998
        %1000 = vmatmul.f32.gmra.mxu0 %v574
        %v1001 = vpop.f32.mrf.mxu0
        %v1002 = vadd.f32 %v793, %v1001
        %1003 = vmatmul.f32.gmra.mxu0 %v576
        %v1004 = vpop.f32.mrf.mxu0
        %v1005 = vadd.f32 %v796, %v1004
        %1006 = vmatmul.f32.gmra.mxu0 %v578
        %v1007 = vpop.f32.mrf.mxu0
        %v1008 = vadd.f32 %v799, %v1007
        %1009 = vmatmul.f32.gmra.mxu0 %v580
        %v1010 = vpop.f32.mrf.mxu0
        %v1011 = vadd.f32 %v802, %v1010
        %1012 = vmatmul.f32.gmra.mxu0 %v582
        %v1013 = vpop.f32.mrf.mxu0
        %v1014 = vadd.f32 %v805, %v1013
        %1015 = vmatmul.f32.gmra.mxu0 %v584
        %v1016 = vpop.f32.mrf.mxu0
        %v1017 = vadd.f32 %v808, %v1016
        %1018 = vmatmul.f32.gmra.mxu0 %v586
        %v1019 = vpop.f32.mrf.mxu0
        %v1020 = vadd.f32 %v811, %v1019
        %1021 = vmatmul.f32.gmra.mxu0 %v588
        %v1022 = vpop.f32.mrf.mxu0
        %v1023 = vadd.f32 %v814, %v1022
        %1024 = vmatmul.f32.gmra.mxu0 %v590
        %v1025 = vpop.f32.mrf.mxu0
        %v1026 = vadd.f32 %v817, %v1025
        %1027 = vmatmul.f32.gmra.mxu0 %v592
        %v1028 = vpop.f32.mrf.mxu0
        %v1029 = vadd.f32 %v820, %v1028
        %1030 = vmatmul.f32.gmra.mxu0 %v594
        %v1031 = vpop.f32.mrf.mxu0
        %v1032 = vadd.f32 %v823, %v1031
        %1033 = vmatmul.f32.gmra.mxu0 %v596
        %v1034 = vpop.f32.mrf.mxu0
        %v1035 = vadd.f32 %v826, %v1034
        %1036 = vmatmul.f32.gmra.mxu0 %v598
        %v1037 = vpop.f32.mrf.mxu0
        %v1038 = vadd.f32 %v829, %v1037
        %1039 = vmatmul.f32.gmra.mxu0 %v600
        %v1040 = vpop.f32.mrf.mxu0
        %v1041 = vadd.f32 %v832, %v1040
        %1042 = vmatmul.f32.gmra.mxu0 %v602
        %v1043 = vpop.f32.mrf.mxu0
        %v1044 = vadd.f32 %v835, %v1043
        %1045 = vmatmul.f32.gmra.mxu0 %v604
        %v1046 = vpop.f32.mrf.mxu0
        %v1047 = vadd.f32 %v838, %v1046
        %1048 = vmatmul.f32.gmra.mxu0 %v606
        %v1049 = vpop.f32.mrf.mxu0
        %v1050 = vadd.f32 %v841, %v1049
        %1051 = vmatmul.f32.gmra.mxu0 %v608
        %v1052 = vpop.f32.mrf.mxu0
        %v1053 = vadd.f32 %v844, %v1052
        %1054 = vmatmul.f32.gmra.mxu0 %v610
        %v1055 = vpop.f32.mrf.mxu0
        %v1056 = vadd.f32 %v847, %v1055
        %1057 = vmatmul.f32.gmra.mxu0 %v612
        %v1058 = vpop.f32.mrf.mxu0
        %v1059 = vadd.f32 %v850, %v1058
        %1060 = vmatmul.f32.gmra.mxu0 %v614
        %v1061 = vpop.f32.mrf.mxu0
        %v1062 = vadd.f32 %v853, %v1061
        %1063 = vmatmul.f32.gmra.mxu0 %v616
        %v1064 = vpop.f32.mrf.mxu0
        %v1065 = vadd.f32 %v856, %v1064
        %1066 = vmatmul.f32.gmra.mxu0 %v618
        %v1067 = vpop.f32.mrf.mxu0
        %v1068 = vadd.f32 %v859, %v1067
        %1069 = vmatmul.f32.gmra.mxu0 %v620
        %v1070 = vpop.f32.mrf.mxu0
        %v1071 = vadd.f32 %v862, %v1070
        %1072 = vmatmul.f32.gmra.mxu0 %v622
        %v1073 = vpop.f32.mrf.mxu0
        %v1074 = vadd.f32 %v865, %v1073
        %1075 = vmatmul.f32.gmra.mxu0 %v624
        %v1076 = vpop.f32.mrf.mxu0
        %v1077 = vadd.f32 %v868, %v1076
        %1078 = vmatmul.f32.gmra.mxu0 %v626
        %v1079 = vpop.f32.mrf.mxu0
        %v1080 = vadd.f32 %v871, %v1079
        %1081 = vmatmul.f32.gmra.mxu0 %v628
        %v1082 = vpop.f32.mrf.mxu0
        %v1083 = vadd.f32 %v874, %v1082
        %1084 = vmatmul.f32.gmra.mxu0 %v630
        %v1085 = vpop.f32.mrf.mxu0
        %v1086 = vadd.f32 %v877, %v1085
        %1087 = vmatmul.f32.gmra.mxu0 %v632
        %v1088 = vpop.f32.mrf.mxu0
        %v1089 = vadd.f32 %v880, %v1088
        %1090 = vmatmul.f32.gmra.mxu0 %v634
        %v1091 = vpop.f32.mrf.mxu0
        %v1092 = vadd.f32 %v883, %v1091
        %1093 = vmatmul.f32.gmra.mxu0 %v636
        %v1094 = vpop.f32.mrf.mxu0
        %v1095 = vadd.f32 %v886, %v1094
        %1096 = vmatmul.f32.gmra.mxu0 %v638
        %v1097 = vpop.f32.mrf.mxu0
        %v1098 = vadd.f32 %v889, %v1097
        %1099 = vmatmul.f32.gmra.mxu0 %v640
        %v1100 = vpop.f32.mrf.mxu0
        %v1101 = vadd.f32 %v892, %v1100
        %1102 = vmatmul.f32.gmra.mxu0 %v642
        %v1103 = vpop.f32.mrf.mxu0
        %v1104 = vadd.f32 %v895, %v1103
        %1105 = vmatmul.f32.gmra.mxu0 %v644
        %v1106 = vpop.f32.mrf.mxu0
        %v1107 = vadd.f32 %v898, %v1106
        %1108 = vmatmul.f32.gmra.mxu0 %v646
        %v1109 = vpop.f32.mrf.mxu0
        %v1110 = vadd.f32 %v901, %v1109
        %1111 = vmatmul.f32.gmra.mxu0 %v648
        %v1112 = vpop.f32.mrf.mxu0
        %v1113 = vadd.f32 %v904, %v1112
        %1114 = vmatmul.f32.gmra.mxu0 %v650
        %v1115 = vpop.f32.mrf.mxu0
        %v1116 = vadd.f32 %v907, %v1115
        %1117 = vmatmul.f32.gmra.mxu0 %v652
        %v1118 = vpop.f32.mrf.mxu0
        %v1119 = vadd.f32 %v910, %v1118
        %1120 = vmatmul.f32.gmra.mxu0 %v654
        %v1121 = vpop.f32.mrf.mxu0
        %v1122 = vadd.f32 %v913, %v1121
        %1123 = vmatmul.f32.gmra.mxu0 %v656
        %v1124 = vpop.f32.mrf.mxu0
        %v1125 = vadd.f32 %v916, %v1124
        %1126 = vmatmul.f32.gmra.mxu0 %v658
        %v1127 = vpop.f32.mrf.mxu0
        %v1128 = vadd.f32 %v919, %v1127
        %1129 = vmatmul.f32.gmra.mxu0 %v660
        %v1130 = vpop.f32.mrf.mxu0
        %v1131 = vadd.f32 %v922, %v1130
        %1132 = vmatmul.f32.gmra.mxu0 %v662
        %v1133 = vpop.f32.mrf.mxu0
        %v1134 = vadd.f32 %v925, %v1133
        %1135 = vmatmul.f32.gmra.mxu0 %v664
        %v1136 = vpop.f32.mrf.mxu0
        %v1137 = vadd.f32 %v928, %v1136
        %1138 = vmatmul.f32.gmra.mxu0 %v666
        %v1139 = vpop.f32.mrf.mxu0
        %v1140 = vadd.f32 %v931, %v1139
        %1141 = vmatmul.f32.gmra.mxu0 %v668
        %v1142 = vpop.f32.mrf.mxu0
        %v1143 = vadd.f32 %v934, %v1142
        %1144 = vmatmul.f32.gmra.mxu0 %v670
        %v1145 = vpop.f32.mrf.mxu0
        %v1146 = vadd.f32 %v937, %v1145
        %1147 = vmatmul.f32.gmra.mxu0 %v672
        %v1148 = vpop.f32.mrf.mxu0
        %v1149 = vadd.f32 %v940, %v1148
        %1150 = vmatmul.f32.gmra.mxu0 %v674
        %v1151 = vpop.f32.mrf.mxu0
        %v1152 = vadd.f32 %v943, %v1151
        %1153 = vmatmul.f32.gmra.mxu0 %v676
        %v1154 = vpop.f32.mrf.mxu0
        %v1155 = vadd.f32 %v946, %v1154
        %1156 = vmatmul.f32.gmra.mxu0 %v678
        %v1157 = vpop.f32.mrf.mxu0
        %v1158 = vadd.f32 %v949, %v1157
        %1159 = vmatmul.f32.gmra.mxu0 %v680
        %v1160 = vpop.f32.mrf.mxu0
        %v1161 = vadd.f32 %v952, %v1160
        %1162 = vdwg.mxu0
        %1163 = vmatpush.msra.mxu0 %v712
        %1164 = vmatpush.msra.mxu0 %v710
        %1165 = vmatpush.msra.mxu0 %v708
        %1166 = vmatpush.msra.mxu0 %v706
        %1167 = vmatpush.msra.mxu0 %v704
        %1168 = vmatpush.msra.mxu0 %v702
        %1169 = vmatpush.msra.mxu0 %v700
        %1170 = vmatpush.msra.mxu0 %v698
        %1171 = vmatpush.msra.mxu0 %v696
        %1172 = vmatpush.msra.mxu0 %v694
        %1173 = vmatpush.msra.mxu0 %v692
        %1174 = vmatpush.msra.mxu0 %v690
        %1175 = vmatpush.msra.mxu0 %v688
        %1176 = vmatpush.msra.mxu0 %v686
        %1177 = vmatpush.msra.mxu0 %v684
        %1178 = vmatpush.msra.mxu0 %v682
        %1179 = vmatmul.f32.gmra.mxu0 %v553
        %v1180 = vpop.f32.mrf.mxu0
        %v1181 = vadd.f32 0.0, %v1180
        %1182 = vmatmul.f32.gmra.mxu0 %v555
        %v1183 = vpop.f32.mrf.mxu0
        %v1184 = vadd.f32 0.0, %v1183
        %1185 = vmatmul.f32.gmra.mxu0 %v557
        %v1186 = vpop.f32.mrf.mxu0
        %v1187 = vadd.f32 0.0, %v1186
        %1188 = vmatmul.f32.gmra.mxu0 %v559
        %v1189 = vpop.f32.mrf.mxu0
        %v1190 = vadd.f32 0.0, %v1189
        %1191 = vmatmul.f32.gmra.mxu0 %v561
        %v1192 = vpop.f32.mrf.mxu0
        %v1193 = vadd.f32 0.0, %v1192
        %1194 = vmatmul.f32.gmra.mxu0 %v563
        %v1195 = vpop.f32.mrf.mxu0
        %v1196 = vadd.f32 0.0, %v1195
        %1197 = vmatmul.f32.gmra.mxu0 %v565
        %v1198 = vpop.f32.mrf.mxu0
        %v1199 = vadd.f32 0.0, %v1198
        %1200 = vmatmul.f32.gmra.mxu0 %v567
        %v1201 = vpop.f32.mrf.mxu0
        %v1202 = vadd.f32 0.0, %v1201
        %1203 = vmatmul.f32.gmra.mxu0 %v569
        %v1204 = vpop.f32.mrf.mxu0
        %v1205 = vadd.f32 0.0, %v1204
        %1206 = vmatmul.f32.gmra.mxu0 %v571
        %v1207 = vpop.f32.mrf.mxu0
        %v1208 = vadd.f32 0.0, %v1207
        %1209 = vmatmul.f32.gmra.mxu0 %v573
        %v1210 = vpop.f32.mrf.mxu0
        %v1211 = vadd.f32 0.0, %v1210
        %1212 = vmatmul.f32.gmra.mxu0 %v575
        %v1213 = vpop.f32.mrf.mxu0
        %v1214 = vadd.f32 0.0, %v1213
        %1215 = vmatmul.f32.gmra.mxu0 %v577
        %v1216 = vpop.f32.mrf.mxu0
        %v1217 = vadd.f32 0.0, %v1216
        %1218 = vmatmul.f32.gmra.mxu0 %v579
        %v1219 = vpop.f32.mrf.mxu0
        %v1220 = vadd.f32 0.0, %v1219
        %1221 = vmatmul.f32.gmra.mxu0 %v581
        %v1222 = vpop.f32.mrf.mxu0
        %v1223 = vadd.f32 0.0, %v1222
        %1224 = vmatmul.f32.gmra.mxu0 %v583
        %v1225 = vpop.f32.mrf.mxu0
        %v1226 = vadd.f32 0.0, %v1225
        %1227 = vmatmul.f32.gmra.mxu0 %v585
        %v1228 = vpop.f32.mrf.mxu0
        %v1229 = vadd.f32 0.0, %v1228
        %1230 = vmatmul.f32.gmra.mxu0 %v587
        %v1231 = vpop.f32.mrf.mxu0
        %v1232 = vadd.f32 0.0, %v1231
        %1233 = vmatmul.f32.gmra.mxu0 %v589
        %v1234 = vpop.f32.mrf.mxu0
        %v1235 = vadd.f32 0.0, %v1234
        %1236 = vmatmul.f32.gmra.mxu0 %v591
        %v1237 = vpop.f32.mrf.mxu0
        %v1238 = vadd.f32 0.0, %v1237
        %1239 = vmatmul.f32.gmra.mxu0 %v593
        %v1240 = vpop.f32.mrf.mxu0
        %v1241 = vadd.f32 0.0, %v1240
        %1242 = vmatmul.f32.gmra.mxu0 %v595
        %v1243 = vpop.f32.mrf.mxu0
        %v1244 = vadd.f32 0.0, %v1243
        %1245 = vmatmul.f32.gmra.mxu0 %v597
        %v1246 = vpop.f32.mrf.mxu0
        %v1247 = vadd.f32 0.0, %v1246
        %1248 = vmatmul.f32.gmra.mxu0 %v599
        %v1249 = vpop.f32.mrf.mxu0
        %v1250 = vadd.f32 0.0, %v1249
        %1251 = vmatmul.f32.gmra.mxu0 %v601
        %v1252 = vpop.f32.mrf.mxu0
        %v1253 = vadd.f32 0.0, %v1252
        %1254 = vmatmul.f32.gmra.mxu0 %v603
        %v1255 = vpop.f32.mrf.mxu0
        %v1256 = vadd.f32 0.0, %v1255
        %1257 = vmatmul.f32.gmra.mxu0 %v605
        %v1258 = vpop.f32.mrf.mxu0
        %v1259 = vadd.f32 0.0, %v1258
        %1260 = vmatmul.f32.gmra.mxu0 %v607
        %v1261 = vpop.f32.mrf.mxu0
        %v1262 = vadd.f32 0.0, %v1261
        %1263 = vmatmul.f32.gmra.mxu0 %v609
        %v1264 = vpop.f32.mrf.mxu0
        %v1265 = vadd.f32 0.0, %v1264
        %1266 = vmatmul.f32.gmra.mxu0 %v611
        %v1267 = vpop.f32.mrf.mxu0
        %v1268 = vadd.f32 0.0, %v1267
        %1269 = vmatmul.f32.gmra.mxu0 %v613
        %v1270 = vpop.f32.mrf.mxu0
        %v1271 = vadd.f32 0.0, %v1270
        %1272 = vmatmul.f32.gmra.mxu0 %v615
        %v1273 = vpop.f32.mrf.mxu0
        %v1274 = vadd.f32 0.0, %v1273
        %1275 = vmatmul.f32.gmra.mxu0 %v617
        %v1276 = vpop.f32.mrf.mxu0
        %v1277 = vadd.f32 0.0, %v1276
        %1278 = vmatmul.f32.gmra.mxu0 %v619
        %v1279 = vpop.f32.mrf.mxu0
        %v1280 = vadd.f32 0.0, %v1279
        %1281 = vmatmul.f32.gmra.mxu0 %v621
        %v1282 = vpop.f32.mrf.mxu0
        %v1283 = vadd.f32 0.0, %v1282
        %1284 = vmatmul.f32.gmra.mxu0 %v623
        %v1285 = vpop.f32.mrf.mxu0
        %v1286 = vadd.f32 0.0, %v1285
        %1287 = vmatmul.f32.gmra.mxu0 %v625
        %v1288 = vpop.f32.mrf.mxu0
        %v1289 = vadd.f32 0.0, %v1288
        %1290 = vmatmul.f32.gmra.mxu0 %v627
        %v1291 = vpop.f32.mrf.mxu0
        %v1292 = vadd.f32 0.0, %v1291
        %1293 = vmatmul.f32.gmra.mxu0 %v629
        %v1294 = vpop.f32.mrf.mxu0
        %v1295 = vadd.f32 0.0, %v1294
        %1296 = vmatmul.f32.gmra.mxu0 %v631
        %v1297 = vpop.f32.mrf.mxu0
        %v1298 = vadd.f32 0.0, %v1297
        %1299 = vmatmul.f32.gmra.mxu0 %v633
        %v1300 = vpop.f32.mrf.mxu0
        %v1301 = vadd.f32 0.0, %v1300
        %1302 = vmatmul.f32.gmra.mxu0 %v635
        %v1303 = vpop.f32.mrf.mxu0
        %v1304 = vadd.f32 0.0, %v1303
        %1305 = vmatmul.f32.gmra.mxu0 %v637
        %v1306 = vpop.f32.mrf.mxu0
        %v1307 = vadd.f32 0.0, %v1306
        %1308 = vmatmul.f32.gmra.mxu0 %v639
        %v1309 = vpop.f32.mrf.mxu0
        %v1310 = vadd.f32 0.0, %v1309
        %1311 = vmatmul.f32.gmra.mxu0 %v641
        %v1312 = vpop.f32.mrf.mxu0
        %v1313 = vadd.f32 0.0, %v1312
        %1314 = vmatmul.f32.gmra.mxu0 %v643
        %v1315 = vpop.f32.mrf.mxu0
        %v1316 = vadd.f32 0.0, %v1315
        %1317 = vmatmul.f32.gmra.mxu0 %v645
        %v1318 = vpop.f32.mrf.mxu0
        %v1319 = vadd.f32 0.0, %v1318
        %1320 = vmatmul.f32.gmra.mxu0 %v647
        %v1321 = vpop.f32.mrf.mxu0
        %v1322 = vadd.f32 0.0, %v1321
        %1323 = vmatmul.f32.gmra.mxu0 %v649
        %v1324 = vpop.f32.mrf.mxu0
        %v1325 = vadd.f32 0.0, %v1324
        %1326 = vmatmul.f32.gmra.mxu0 %v651
        %v1327 = vpop.f32.mrf.mxu0
        %v1328 = vadd.f32 0.0, %v1327
        %1329 = vmatmul.f32.gmra.mxu0 %v653
        %v1330 = vpop.f32.mrf.mxu0
        %v1331 = vadd.f32 0.0, %v1330
        %1332 = vmatmul.f32.gmra.mxu0 %v655
        %v1333 = vpop.f32.mrf.mxu0
        %v1334 = vadd.f32 0.0, %v1333
        %1335 = vmatmul.f32.gmra.mxu0 %v657
        %v1336 = vpop.f32.mrf.mxu0
        %v1337 = vadd.f32 0.0, %v1336
        %1338 = vmatmul.f32.gmra.mxu0 %v659
        %v1339 = vpop.f32.mrf.mxu0
        %v1340 = vadd.f32 0.0, %v1339
        %1341 = vmatmul.f32.gmra.mxu0 %v661
        %v1342 = vpop.f32.mrf.mxu0
        %v1343 = vadd.f32 0.0, %v1342
        %1344 = vmatmul.f32.gmra.mxu0 %v663
        %v1345 = vpop.f32.mrf.mxu0
        %v1346 = vadd.f32 0.0, %v1345
        %1347 = vmatmul.f32.gmra.mxu0 %v665
        %v1348 = vpop.f32.mrf.mxu0
        %v1349 = vadd.f32 0.0, %v1348
        %1350 = vmatmul.f32.gmra.mxu0 %v667
        %v1351 = vpop.f32.mrf.mxu0
        %v1352 = vadd.f32 0.0, %v1351
        %1353 = vmatmul.f32.gmra.mxu0 %v669
        %v1354 = vpop.f32.mrf.mxu0
        %v1355 = vadd.f32 0.0, %v1354
        %1356 = vmatmul.f32.gmra.mxu0 %v671
        %v1357 = vpop.f32.mrf.mxu0
        %v1358 = vadd.f32 0.0, %v1357
        %1359 = vmatmul.f32.gmra.mxu0 %v673
        %v1360 = vpop.f32.mrf.mxu0
        %v1361 = vadd.f32 0.0, %v1360
        %1362 = vmatmul.f32.gmra.mxu0 %v675
        %v1363 = vpop.f32.mrf.mxu0
        %v1364 = vadd.f32 0.0, %v1363
        %1365 = vmatmul.f32.gmra.mxu0 %v677
        %v1366 = vpop.f32.mrf.mxu0
        %v1367 = vadd.f32 0.0, %v1366
        %1368 = vmatmul.f32.gmra.mxu0 %v679
        %v1369 = vpop.f32.mrf.mxu0
        %v1370 = vadd.f32 0.0, %v1369
        %1371 = vdwg.mxu0
        %1372 = vmatpush.msra.mxu0 %v744
        %1373 = vmatpush.msra.mxu0 %v742
        %1374 = vmatpush.msra.mxu0 %v740
        %1375 = vmatpush.msra.mxu0 %v738
        %1376 = vmatpush.msra.mxu0 %v736
        %1377 = vmatpush.msra.mxu0 %v734
        %1378 = vmatpush.msra.mxu0 %v732
        %1379 = vmatpush.msra.mxu0 %v730
        %1380 = vmatpush.msra.mxu0 %v728
        %1381 = vmatpush.msra.mxu0 %v726
        %1382 = vmatpush.msra.mxu0 %v724
        %1383 = vmatpush.msra.mxu0 %v722
        %1384 = vmatpush.msra.mxu0 %v720
        %1385 = vmatpush.msra.mxu0 %v718
        %1386 = vmatpush.msra.mxu0 %v716
        %1387 = vmatpush.msra.mxu0 %v714
        %1388 = vmatmul.f32.gmra.mxu0 %v554
        %v1389 = vpop.f32.mrf.mxu0
        %v1390 = vadd.f32 %v1181, %v1389
        %1391 = vmatmul.f32.gmra.mxu0 %v556
        %v1392 = vpop.f32.mrf.mxu0
        %v1393 = vadd.f32 %v1184, %v1392
        %1394 = vmatmul.f32.gmra.mxu0 %v558
        %v1395 = vpop.f32.mrf.mxu0
        %v1396 = vadd.f32 %v1187, %v1395
        %1397 = vmatmul.f32.gmra.mxu0 %v560
        %v1398 = vpop.f32.mrf.mxu0
        %v1399 = vadd.f32 %v1190, %v1398
        %1400 = vmatmul.f32.gmra.mxu0 %v562
        %v1401 = vpop.f32.mrf.mxu0
        %v1402 = vadd.f32 %v1193, %v1401
        %1403 = vmatmul.f32.gmra.mxu0 %v564
        %v1404 = vpop.f32.mrf.mxu0
        %v1405 = vadd.f32 %v1196, %v1404
        %1406 = vmatmul.f32.gmra.mxu0 %v566
        %v1407 = vpop.f32.mrf.mxu0
        %v1408 = vadd.f32 %v1199, %v1407
        %1409 = vmatmul.f32.gmra.mxu0 %v568
        %v1410 = vpop.f32.mrf.mxu0
        %v1411 = vadd.f32 %v1202, %v1410
        %1412 = vmatmul.f32.gmra.mxu0 %v570
        %v1413 = vpop.f32.mrf.mxu0
        %v1414 = vadd.f32 %v1205, %v1413
        %1415 = vmatmul.f32.gmra.mxu0 %v572
        %v1416 = vpop.f32.mrf.mxu0
        %v1417 = vadd.f32 %v1208, %v1416
        %1418 = vmatmul.f32.gmra.mxu0 %v574
        %v1419 = vpop.f32.mrf.mxu0
        %v1420 = vadd.f32 %v1211, %v1419
        %1421 = vmatmul.f32.gmra.mxu0 %v576
        %v1422 = vpop.f32.mrf.mxu0
        %v1423 = vadd.f32 %v1214, %v1422
        %1424 = vmatmul.f32.gmra.mxu0 %v578
        %v1425 = vpop.f32.mrf.mxu0
        %v1426 = vadd.f32 %v1217, %v1425
        %1427 = vmatmul.f32.gmra.mxu0 %v580
        %v1428 = vpop.f32.mrf.mxu0
        %v1429 = vadd.f32 %v1220, %v1428
        %1430 = vmatmul.f32.gmra.mxu0 %v582
        %v1431 = vpop.f32.mrf.mxu0
        %v1432 = vadd.f32 %v1223, %v1431
        %1433 = vmatmul.f32.gmra.mxu0 %v584
        %v1434 = vpop.f32.mrf.mxu0
        %v1435 = vadd.f32 %v1226, %v1434
        %1436 = vmatmul.f32.gmra.mxu0 %v586
        %v1437 = vpop.f32.mrf.mxu0
        %v1438 = vadd.f32 %v1229, %v1437
        %1439 = vmatmul.f32.gmra.mxu0 %v588
        %v1440 = vpop.f32.mrf.mxu0
        %v1441 = vadd.f32 %v1232, %v1440
        %1442 = vmatmul.f32.gmra.mxu0 %v590
        %v1443 = vpop.f32.mrf.mxu0
        %v1444 = vadd.f32 %v1235, %v1443
        %1445 = vmatmul.f32.gmra.mxu0 %v592
        %v1446 = vpop.f32.mrf.mxu0
        %v1447 = vadd.f32 %v1238, %v1446
        %1448 = vmatmul.f32.gmra.mxu0 %v594
        %v1449 = vpop.f32.mrf.mxu0
        %v1450 = vadd.f32 %v1241, %v1449
        %1451 = vmatmul.f32.gmra.mxu0 %v596
        %v1452 = vpop.f32.mrf.mxu0
        %v1453 = vadd.f32 %v1244, %v1452
        %1454 = vmatmul.f32.gmra.mxu0 %v598
        %v1455 = vpop.f32.mrf.mxu0
        %v1456 = vadd.f32 %v1247, %v1455
        %1457 = vmatmul.f32.gmra.mxu0 %v600
        %v1458 = vpop.f32.mrf.mxu0
        %v1459 = vadd.f32 %v1250, %v1458
        %1460 = vmatmul.f32.gmra.mxu0 %v602
        %v1461 = vpop.f32.mrf.mxu0
        %v1462 = vadd.f32 %v1253, %v1461
        %1463 = vmatmul.f32.gmra.mxu0 %v604
        %v1464 = vpop.f32.mrf.mxu0
        %v1465 = vadd.f32 %v1256, %v1464
        %1466 = vmatmul.f32.gmra.mxu0 %v606
        %v1467 = vpop.f32.mrf.mxu0
        %v1468 = vadd.f32 %v1259, %v1467
        %1469 = vmatmul.f32.gmra.mxu0 %v608
        %v1470 = vpop.f32.mrf.mxu0
        %v1471 = vadd.f32 %v1262, %v1470
        %1472 = vmatmul.f32.gmra.mxu0 %v610
        %v1473 = vpop.f32.mrf.mxu0
        %v1474 = vadd.f32 %v1265, %v1473
        %1475 = vmatmul.f32.gmra.mxu0 %v612
        %v1476 = vpop.f32.mrf.mxu0
        %v1477 = vadd.f32 %v1268, %v1476
        %1478 = vmatmul.f32.gmra.mxu0 %v614
        %v1479 = vpop.f32.mrf.mxu0
        %v1480 = vadd.f32 %v1271, %v1479
        %1481 = vmatmul.f32.gmra.mxu0 %v616
        %v1482 = vpop.f32.mrf.mxu0
        %v1483 = vadd.f32 %v1274, %v1482
        %1484 = vmatmul.f32.gmra.mxu0 %v618
        %v1485 = vpop.f32.mrf.mxu0
        %v1486 = vadd.f32 %v1277, %v1485
        %1487 = vmatmul.f32.gmra.mxu0 %v620
        %v1488 = vpop.f32.mrf.mxu0
        %v1489 = vadd.f32 %v1280, %v1488
        %1490 = vmatmul.f32.gmra.mxu0 %v622
        %v1491 = vpop.f32.mrf.mxu0
        %v1492 = vadd.f32 %v1283, %v1491
        %1493 = vmatmul.f32.gmra.mxu0 %v624
        %v1494 = vpop.f32.mrf.mxu0
        %v1495 = vadd.f32 %v1286, %v1494
        %1496 = vmatmul.f32.gmra.mxu0 %v626
        %v1497 = vpop.f32.mrf.mxu0
        %v1498 = vadd.f32 %v1289, %v1497
        %1499 = vmatmul.f32.gmra.mxu0 %v628
        %v1500 = vpop.f32.mrf.mxu0
        %v1501 = vadd.f32 %v1292, %v1500
        %1502 = vmatmul.f32.gmra.mxu0 %v630
        %v1503 = vpop.f32.mrf.mxu0
        %v1504 = vadd.f32 %v1295, %v1503
        %1505 = vmatmul.f32.gmra.mxu0 %v632
        %v1506 = vpop.f32.mrf.mxu0
        %v1507 = vadd.f32 %v1298, %v1506
        %1508 = vmatmul.f32.gmra.mxu0 %v634
        %v1509 = vpop.f32.mrf.mxu0
        %v1510 = vadd.f32 %v1301, %v1509
        %1511 = vmatmul.f32.gmra.mxu0 %v636
        %v1512 = vpop.f32.mrf.mxu0
        %v1513 = vadd.f32 %v1304, %v1512
        %1514 = vmatmul.f32.gmra.mxu0 %v638
        %v1515 = vpop.f32.mrf.mxu0
        %v1516 = vadd.f32 %v1307, %v1515
        %1517 = vmatmul.f32.gmra.mxu0 %v640
        %v1518 = vpop.f32.mrf.mxu0
        %v1519 = vadd.f32 %v1310, %v1518
        %1520 = vmatmul.f32.gmra.mxu0 %v642
        %v1521 = vpop.f32.mrf.mxu0
        %v1522 = vadd.f32 %v1313, %v1521
        %1523 = vmatmul.f32.gmra.mxu0 %v644
        %v1524 = vpop.f32.mrf.mxu0
        %v1525 = vadd.f32 %v1316, %v1524
        %1526 = vmatmul.f32.gmra.mxu0 %v646
        %v1527 = vpop.f32.mrf.mxu0
        %v1528 = vadd.f32 %v1319, %v1527
        %1529 = vmatmul.f32.gmra.mxu0 %v648
        %v1530 = vpop.f32.mrf.mxu0
        %v1531 = vadd.f32 %v1322, %v1530
        %1532 = vmatmul.f32.gmra.mxu0 %v650
        %v1533 = vpop.f32.mrf.mxu0
        %v1534 = vadd.f32 %v1325, %v1533
        %1535 = vmatmul.f32.gmra.mxu0 %v652
        %v1536 = vpop.f32.mrf.mxu0
        %v1537 = vadd.f32 %v1328, %v1536
        %1538 = vmatmul.f32.gmra.mxu0 %v654
        %v1539 = vpop.f32.mrf.mxu0
        %v1540 = vadd.f32 %v1331, %v1539
        %1541 = vmatmul.f32.gmra.mxu0 %v656
        %v1542 = vpop.f32.mrf.mxu0
        %v1543 = vadd.f32 %v1334, %v1542
        %1544 = vmatmul.f32.gmra.mxu0 %v658
        %v1545 = vpop.f32.mrf.mxu0
        %v1546 = vadd.f32 %v1337, %v1545
        %1547 = vmatmul.f32.gmra.mxu0 %v660
        %v1548 = vpop.f32.mrf.mxu0
        %v1549 = vadd.f32 %v1340, %v1548
        %1550 = vmatmul.f32.gmra.mxu0 %v662
        %v1551 = vpop.f32.mrf.mxu0
        %v1552 = vadd.f32 %v1343, %v1551
        %1553 = vmatmul.f32.gmra.mxu0 %v664
        %v1554 = vpop.f32.mrf.mxu0
        %v1555 = vadd.f32 %v1346, %v1554
        %1556 = vmatmul.f32.gmra.mxu0 %v666
        %v1557 = vpop.f32.mrf.mxu0
        %v1558 = vadd.f32 %v1349, %v1557
        %1559 = vmatmul.f32.gmra.mxu0 %v668
        %v1560 = vpop.f32.mrf.mxu0
        %v1561 = vadd.f32 %v1352, %v1560
        %1562 = vmatmul.f32.gmra.mxu0 %v670
        %v1563 = vpop.f32.mrf.mxu0
        %v1564 = vadd.f32 %v1355, %v1563
        %1565 = vmatmul.f32.gmra.mxu0 %v672
        %v1566 = vpop.f32.mrf.mxu0
        %v1567 = vadd.f32 %v1358, %v1566
        %1568 = vmatmul.f32.gmra.mxu0 %v674
        %v1569 = vpop.f32.mrf.mxu0
        %v1570 = vadd.f32 %v1361, %v1569
        %1571 = vmatmul.f32.gmra.mxu0 %v676
        %v1572 = vpop.f32.mrf.mxu0
        %v1573 = vadd.f32 %v1364, %v1572
        %1574 = vmatmul.f32.gmra.mxu0 %v678
        %v1575 = vpop.f32.mrf.mxu0
        %v1576 = vadd.f32 %v1367, %v1575
        %1577 = vmatmul.f32.gmra.mxu0 %v680
        %v1578 = vpop.f32.mrf.mxu0
        %v1579 = vadd.f32 %v1370, %v1578
        %1580 = vdwg.mxu0
        %v1581 = vadd.f32 %v425, %v972
        %v1582 = vadd.f32 %v426, %v1390
        %v1583 = vadd.f32 %v427, %v975
        %v1584 = vadd.f32 %v428, %v1393
        %v1585 = vadd.f32 %v429, %v978
        %v1586 = vadd.f32 %v430, %v1396
        %v1587 = vadd.f32 %v431, %v981
        %v1588 = vadd.f32 %v432, %v1399
        %v1589 = vadd.f32 %v433, %v984
        %v1590 = vadd.f32 %v434, %v1402
        %v1591 = vadd.f32 %v435, %v987
        %v1592 = vadd.f32 %v436, %v1405
        %v1593 = vadd.f32 %v437, %v990
        %v1594 = vadd.f32 %v438, %v1408
        %v1595 = vadd.f32 %v439, %v993
        %v1596 = vadd.f32 %v440, %v1411
        %v1597 = vadd.f32 %v441, %v996
        %v1598 = vadd.f32 %v442, %v1414
        %v1599 = vadd.f32 %v443, %v999
        %v1600 = vadd.f32 %v444, %v1417
        %v1601 = vadd.f32 %v445, %v1002
        %v1602 = vadd.f32 %v446, %v1420
        %v1603 = vadd.f32 %v447, %v1005
        %v1604 = vadd.f32 %v448, %v1423
        %v1605 = vadd.f32 %v449, %v1008
        %v1606 = vadd.f32 %v450, %v1426
        %v1607 = vadd.f32 %v451, %v1011
        %v1608 = vadd.f32 %v452, %v1429
        %v1609 = vadd.f32 %v453, %v1014
        %v1610 = vadd.f32 %v454, %v1432
        %v1611 = vadd.f32 %v455, %v1017
        %v1612 = vadd.f32 %v456, %v1435
        %v1613 = vadd.f32 %v457, %v1020
        %v1614 = vadd.f32 %v458, %v1438
        %v1615 = vadd.f32 %v459, %v1023
        %v1616 = vadd.f32 %v460, %v1441
        %v1617 = vadd.f32 %v461, %v1026
        %v1618 = vadd.f32 %v462, %v1444
        %v1619 = vadd.f32 %v463, %v1029
        %v1620 = vadd.f32 %v464, %v1447
        %v1621 = vadd.f32 %v465, %v1032
        %v1622 = vadd.f32 %v466, %v1450
        %v1623 = vadd.f32 %v467, %v1035
        %v1624 = vadd.f32 %v468, %v1453
        %v1625 = vadd.f32 %v469, %v1038
        %v1626 = vadd.f32 %v470, %v1456
        %v1627 = vadd.f32 %v471, %v1041
        %v1628 = vadd.f32 %v472, %v1459
        %v1629 = vadd.f32 %v473, %v1044
        %v1630 = vadd.f32 %v474, %v1462
        %v1631 = vadd.f32 %v475, %v1047
        %v1632 = vadd.f32 %v476, %v1465
        %v1633 = vadd.f32 %v477, %v1050
        %v1634 = vadd.f32 %v478, %v1468
        %v1635 = vadd.f32 %v479, %v1053
        %v1636 = vadd.f32 %v480, %v1471
        %v1637 = vadd.f32 %v481, %v1056
        %v1638 = vadd.f32 %v482, %v1474
        %v1639 = vadd.f32 %v483, %v1059
        %v1640 = vadd.f32 %v484, %v1477
        %v1641 = vadd.f32 %v485, %v1062
        %v1642 = vadd.f32 %v486, %v1480
        %v1643 = vadd.f32 %v487, %v1065
        %v1644 = vadd.f32 %v488, %v1483
        %v1645 = vadd.f32 %v489, %v1068
        %v1646 = vadd.f32 %v490, %v1486
        %v1647 = vadd.f32 %v491, %v1071
        %v1648 = vadd.f32 %v492, %v1489
        %v1649 = vadd.f32 %v493, %v1074
        %v1650 = vadd.f32 %v494, %v1492
        %v1651 = vadd.f32 %v495, %v1077
        %v1652 = vadd.f32 %v496, %v1495
        %v1653 = vadd.f32 %v497, %v1080
        %v1654 = vadd.f32 %v498, %v1498
        %v1655 = vadd.f32 %v499, %v1083
        %v1656 = vadd.f32 %v500, %v1501
        %v1657 = vadd.f32 %v501, %v1086
        %v1658 = vadd.f32 %v502, %v1504
        %v1659 = vadd.f32 %v503, %v1089
        %v1660 = vadd.f32 %v504, %v1507
        %v1661 = vadd.f32 %v505, %v1092
        %v1662 = vadd.f32 %v506, %v1510
        %v1663 = vadd.f32 %v507, %v1095
        %v1664 = vadd.f32 %v508, %v1513
        %v1665 = vadd.f32 %v509, %v1098
        %v1666 = vadd.f32 %v510, %v1516
        %v1667 = vadd.f32 %v511, %v1101
        %v1668 = vadd.f32 %v512, %v1519
        %v1669 = vadd.f32 %v513, %v1104
        %v1670 = vadd.f32 %v514, %v1522
        %v1671 = vadd.f32 %v515, %v1107
        %v1672 = vadd.f32 %v516, %v1525
        %v1673 = vadd.f32 %v517, %v1110
        %v1674 = vadd.f32 %v518, %v1528
        %v1675 = vadd.f32 %v519, %v1113
        %v1676 = vadd.f32 %v520, %v1531
        %v1677 = vadd.f32 %v521, %v1116
        %v1678 = vadd.f32 %v522, %v1534
        %v1679 = vadd.f32 %v523, %v1119
        %v1680 = vadd.f32 %v524, %v1537
        %v1681 = vadd.f32 %v525, %v1122
        %v1682 = vadd.f32 %v526, %v1540
        %v1683 = vadd.f32 %v527, %v1125
        %v1684 = vadd.f32 %v528, %v1543
        %v1685 = vadd.f32 %v529, %v1128
        %v1686 = vadd.f32 %v530, %v1546
        %v1687 = vadd.f32 %v531, %v1131
        %v1688 = vadd.f32 %v532, %v1549
        %v1689 = vadd.f32 %v533, %v1134
        %v1690 = vadd.f32 %v534, %v1552
        %v1691 = vadd.f32 %v535, %v1137
        %v1692 = vadd.f32 %v536, %v1555
        %v1693 = vadd.f32 %v537, %v1140
        %v1694 = vadd.f32 %v538, %v1558
        %v1695 = vadd.f32 %v539, %v1143
        %v1696 = vadd.f32 %v540, %v1561
        %v1697 = vadd.f32 %v541, %v1146
        %v1698 = vadd.f32 %v542, %v1564
        %v1699 = vadd.f32 %v543, %v1149
        %v1700 = vadd.f32 %v544, %v1567
        %v1701 = vadd.f32 %v545, %v1152
        %v1702 = vadd.f32 %v546, %v1570
        %v1703 = vadd.f32 %v547, %v1155
        %v1704 = vadd.f32 %v548, %v1573
        %v1705 = vadd.f32 %v549, %v1158
        %v1706 = vadd.f32 %v550, %v1576
        %v1707 = vadd.f32 %v551, %v1161
        %v1708 = vadd.f32 %v552, %v1579
        %1709 = vst [vmem:[#allocation2] sm:$0xff] %v1581
        %1710 = vst [vmem:[#allocation2 + $0x8] sm:$0xff] %v1582
        %1711 = vst [vmem:[#allocation2 + $0x10] sm:$0xff] %v1583
        %1712 = vst [vmem:[#allocation2 + $0x18] sm:$0xff] %v1584
        %1713 = vst [vmem:[#allocation2 + $0x20] sm:$0xff] %v1585
        %1714 = vst [vmem:[#allocation2 + $0x28] sm:$0xff] %v1586
        %1715 = vst [vmem:[#allocation2 + $0x30] sm:$0xff] %v1587
        %1716 = vst [vmem:[#allocation2 + $0x38] sm:$0xff] %v1588
        %1717 = vst [vmem:[#allocation2 + $0x40] sm:$0xff] %v1589
        %1718 = vst [vmem:[#allocation2 + $0x48] sm:$0xff] %v1590
        %1719 = vst [vmem:[#allocation2 + $0x50] sm:$0xff] %v1591
        %1720 = vst [vmem:[#allocation2 + $0x58] sm:$0xff] %v1592
        %1721 = vst [vmem:[#allocation2 + $0x60] sm:$0xff] %v1593
        %1722 = vst [vmem:[#allocation2 + $0x68] sm:$0xff] %v1594
        %1723 = vst [vmem:[#allocation2 + $0x70] sm:$0xff] %v1595
        %1724 = vst [vmem:[#allocation2 + $0x78] sm:$0xff] %v1596
        %1725 = vst [vmem:[#allocation2 + $0x80] sm:$0xff] %v1597
        %1726 = vst [vmem:[#allocation2 + $0x88] sm:$0xff] %v1598
        %1727 = vst [vmem:[#allocation2 + $0x90] sm:$0xff] %v1599
        %1728 = vst [vmem:[#allocation2 + $0x98] sm:$0xff] %v1600
        %1729 = vst [vmem:[#allocation2 + $0xa0] sm:$0xff] %v1601
        %1730 = vst [vmem:[#allocation2 + $0xa8] sm:$0xff] %v1602
        %1731 = vst [vmem:[#allocation2 + $0xb0] sm:$0xff] %v1603
        %1732 = vst [vmem:[#allocation2 + $0xb8] sm:$0xff] %v1604
        %1733 = vst [vmem:[#allocation2 + $0xc0] sm:$0xff] %v1605
        %1734 = vst [vmem:[#allocation2 + $0xc8] sm:$0xff] %v1606
        %1735 = vst [vmem:[#allocation2 + $0xd0] sm:$0xff] %v1607
        %1736 = vst [vmem:[#allocation2 + $0xd8] sm:$0xff] %v1608
        %1737 = vst [vmem:[#allocation2 + $0xe0] sm:$0xff] %v1609
        %1738 = vst [vmem:[#allocation2 + $0xe8] sm:$0xff] %v1610
        %1739 = vst [vmem:[#allocation2 + $0xf0] sm:$0xff] %v1611
        %1740 = vst [vmem:[#allocation2 + $0xf8] sm:$0xff] %v1612
        %1741 = vst [vmem:[#allocation2 + $0x100] sm:$0xff] %v1613
        %1742 = vst [vmem:[#allocation2 + $0x108] sm:$0xff] %v1614
        %1743 = vst [vmem:[#allocation2 + $0x110] sm:$0xff] %v1615
        %1744 = vst [vmem:[#allocation2 + $0x118] sm:$0xff] %v1616
        %1745 = vst [vmem:[#allocation2 + $0x120] sm:$0xff] %v1617
        %1746 = vst [vmem:[#allocation2 + $0x128] sm:$0xff] %v1618
        %1747 = vst [vmem:[#allocation2 + $0x130] sm:$0xff] %v1619
        %1748 = vst [vmem:[#allocation2 + $0x138] sm:$0xff] %v1620
        %1749 = vst [vmem:[#allocation2 + $0x140] sm:$0xff] %v1621
        %1750 = vst [vmem:[#allocation2 + $0x148] sm:$0xff] %v1622
        %1751 = vst [vmem:[#allocation2 + $0x150] sm:$0xff] %v1623
        %1752 = vst [vmem:[#allocation2 + $0x158] sm:$0xff] %v1624
        %1753 = vst [vmem:[#allocation2 + $0x160] sm:$0xff] %v1625
        %1754 = vst [vmem:[#allocation2 + $0x168] sm:$0xff] %v1626
        %1755 = vst [vmem:[#allocation2 + $0x170] sm:$0xff] %v1627
        %1756 = vst [vmem:[#allocation2 + $0x178] sm:$0xff] %v1628
        %1757 = vst [vmem:[#allocation2 + $0x180] sm:$0xff] %v1629
        %1758 = vst [vmem:[#allocation2 + $0x188] sm:$0xff] %v1630
        %1759 = vst [vmem:[#allocation2 + $0x190] sm:$0xff] %v1631
        %1760 = vst [vmem:[#allocation2 + $0x198] sm:$0xff] %v1632
        %1761 = vst [vmem:[#allocation2 + $0x1a0] sm:$0xff] %v1633
        %1762 = vst [vmem:[#allocation2 + $0x1a8] sm:$0xff] %v1634
        %1763 = vst [vmem:[#allocation2 + $0x1b0] sm:$0xff] %v1635
        %1764 = vst [vmem:[#allocation2 + $0x1b8] sm:$0xff] %v1636
        %1765 = vst [vmem:[#allocation2 + $0x1c0] sm:$0xff] %v1637
        %1766 = vst [vmem:[#allocation2 + $0x1c8] sm:$0xff] %v1638
        %1767 = vst [vmem:[#allocation2 + $0x1d0] sm:$0xff] %v1639
        %1768 = vst [vmem:[#allocation2 + $0x1d8] sm:$0xff] %v1640
        %1769 = vst [vmem:[#allocation2 + $0x1e0] sm:$0xff] %v1641
        %1770 = vst [vmem:[#allocation2 + $0x1e8] sm:$0xff] %v1642
        %1771 = vst [vmem:[#allocation2 + $0x1f0] sm:$0xff] %v1643
        %1772 = vst [vmem:[#allocation2 + $0x1f8] sm:$0xff] %v1644
        %1773 = vst [vmem:[#allocation2 + $0x200] sm:$0xff] %v1645
        %1774 = vst [vmem:[#allocation2 + $0x208] sm:$0xff] %v1646
        %1775 = vst [vmem:[#allocation2 + $0x210] sm:$0xff] %v1647
        %1776 = vst [vmem:[#allocation2 + $0x218] sm:$0xff] %v1648
        %1777 = vst [vmem:[#allocation2 + $0x220] sm:$0xff] %v1649
        %1778 = vst [vmem:[#allocation2 + $0x228] sm:$0xff] %v1650
        %1779 = vst [vmem:[#allocation2 + $0x230] sm:$0xff] %v1651
        %1780 = vst [vmem:[#allocation2 + $0x238] sm:$0xff] %v1652
        %1781 = vst [vmem:[#allocation2 + $0x240] sm:$0xff] %v1653
        %1782 = vst [vmem:[#allocation2 + $0x248] sm:$0xff] %v1654
        %1783 = vst [vmem:[#allocation2 + $0x250] sm:$0xff] %v1655
        %1784 = vst [vmem:[#allocation2 + $0x258] sm:$0xff] %v1656
        %1785 = vst [vmem:[#allocation2 + $0x260] sm:$0xff] %v1657
        %1786 = vst [vmem:[#allocation2 + $0x268] sm:$0xff] %v1658
        %1787 = vst [vmem:[#allocation2 + $0x270] sm:$0xff] %v1659
        %1788 = vst [vmem:[#allocation2 + $0x278] sm:$0xff] %v1660
        %1789 = vst [vmem:[#allocation2 + $0x280] sm:$0xff] %v1661
        %1790 = vst [vmem:[#allocation2 + $0x288] sm:$0xff] %v1662
        %1791 = vst [vmem:[#allocation2 + $0x290] sm:$0xff] %v1663
        %1792 = vst [vmem:[#allocation2 + $0x298] sm:$0xff] %v1664
        %1793 = vst [vmem:[#allocation2 + $0x2a0] sm:$0xff] %v1665
        %1794 = vst [vmem:[#allocation2 + $0x2a8] sm:$0xff] %v1666
        %1795 = vst [vmem:[#allocation2 + $0x2b0] sm:$0xff] %v1667
        %1796 = vst [vmem:[#allocation2 + $0x2b8] sm:$0xff] %v1668
        %1797 = vst [vmem:[#allocation2 + $0x2c0] sm:$0xff] %v1669
        %1798 = vst [vmem:[#allocation2 + $0x2c8] sm:$0xff] %v1670
        %1799 = vst [vmem:[#allocation2 + $0x2d0] sm:$0xff] %v1671
        %1800 = vst [vmem:[#allocation2 + $0x2d8] sm:$0xff] %v1672
        %1801 = vst [vmem:[#allocation2 + $0x2e0] sm:$0xff] %v1673
        %1802 = vst [vmem:[#allocation2 + $0x2e8] sm:$0xff] %v1674
        %1803 = vst [vmem:[#allocation2 + $0x2f0] sm:$0xff] %v1675
        %1804 = vst [vmem:[#allocation2 + $0x2f8] sm:$0xff] %v1676
        %1805 = vst [vmem:[#allocation2 + $0x300] sm:$0xff] %v1677
        %1806 = vst [vmem:[#allocation2 + $0x308] sm:$0xff] %v1678
        %1807 = vst [vmem:[#allocation2 + $0x310] sm:$0xff] %v1679
        %1808 = vst [vmem:[#allocation2 + $0x318] sm:$0xff] %v1680
        %1809 = vst [vmem:[#allocation2 + $0x320] sm:$0xff] %v1681
        %1810 = vst [vmem:[#allocation2 + $0x328] sm:$0xff] %v1682
        %1811 = vst [vmem:[#allocation2 + $0x330] sm:$0xff] %v1683
        %1812 = vst [vmem:[#allocation2 + $0x338] sm:$0xff] %v1684
        %1813 = vst [vmem:[#allocation2 + $0x340] sm:$0xff] %v1685
        %1814 = vst [vmem:[#allocation2 + $0x348] sm:$0xff] %v1686
        %1815 = vst [vmem:[#allocation2 + $0x350] sm:$0xff] %v1687
        %1816 = vst [vmem:[#allocation2 + $0x358] sm:$0xff] %v1688
        %1817 = vst [vmem:[#allocation2 + $0x360] sm:$0xff] %v1689
        %1818 = vst [vmem:[#allocation2 + $0x368] sm:$0xff] %v1690
        %1819 = vst [vmem:[#allocation2 + $0x370] sm:$0xff] %v1691
        %1820 = vst [vmem:[#allocation2 + $0x378] sm:$0xff] %v1692
        %1821 = vst [vmem:[#allocation2 + $0x380] sm:$0xff] %v1693
        %1822 = vst [vmem:[#allocation2 + $0x388] sm:$0xff] %v1694
        %1823 = vst [vmem:[#allocation2 + $0x390] sm:$0xff] %v1695
        %1824 = vst [vmem:[#allocation2 + $0x398] sm:$0xff] %v1696
        %1825 = vst [vmem:[#allocation2 + $0x3a0] sm:$0xff] %v1697
        %1826 = vst [vmem:[#allocation2 + $0x3a8] sm:$0xff] %v1698
        %1827 = vst [vmem:[#allocation2 + $0x3b0] sm:$0xff] %v1699
        %1828 = vst [vmem:[#allocation2 + $0x3b8] sm:$0xff] %v1700
        %1829 = vst [vmem:[#allocation2 + $0x3c0] sm:$0xff] %v1701
        %1830 = vst [vmem:[#allocation2 + $0x3c8] sm:$0xff] %v1702
        %1831 = vst [vmem:[#allocation2 + $0x3d0] sm:$0xff] %v1703
        %1832 = vst [vmem:[#allocation2 + $0x3d8] sm:$0xff] %v1704
        %1833 = vst [vmem:[#allocation2 + $0x3e0] sm:$0xff] %v1705
        %1834 = vst [vmem:[#allocation2 + $0x3e8] sm:$0xff] %v1706
        %1835 = vst [vmem:[#allocation2 + $0x3f0] sm:$0xff] %v1707
        %1836 = vst [vmem:[#allocation2 + $0x3f8] sm:$0xff] %v1708
        // Predicated region
        $region49: #{tpu_custom_call.1} parent=31 // pred_check
          %p1837 = pneg %p293
        $region50: #{tpu_custom_call.1} parent=31 // pred_check_branch
          %1839 = sbr.rel (%p1837) target = $region52
        $region51: #{tpu_custom_call.1} parent=31 // pred_region
          %v1840 = vld [vmem:[#allocation2] sm:$0xff]
          %v1841 = vld [vmem:[#allocation2 + $0x8] sm:$0xff]
          %v1842 = vld [vmem:[#allocation2 + $0x10] sm:$0xff]
          %v1843 = vld [vmem:[#allocation2 + $0x18] sm:$0xff]
          %v1844 = vld [vmem:[#allocation2 + $0x20] sm:$0xff]
          %v1845 = vld [vmem:[#allocation2 + $0x28] sm:$0xff]
          %v1846 = vld [vmem:[#allocation2 + $0x30] sm:$0xff]
          %v1847 = vld [vmem:[#allocation2 + $0x38] sm:$0xff]
          %v1848 = vld [vmem:[#allocation2 + $0x40] sm:$0xff]
          %v1849 = vld [vmem:[#allocation2 + $0x48] sm:$0xff]
          %v1850 = vld [vmem:[#allocation2 + $0x50] sm:$0xff]
          %v1851 = vld [vmem:[#allocation2 + $0x58] sm:$0xff]
          %v1852 = vld [vmem:[#allocation2 + $0x60] sm:$0xff]
          %v1853 = vld [vmem:[#allocation2 + $0x68] sm:$0xff]
          %v1854 = vld [vmem:[#allocation2 + $0x70] sm:$0xff]
          %v1855 = vld [vmem:[#allocation2 + $0x78] sm:$0xff]
          %v1856 = vld [vmem:[#allocation2 + $0x80] sm:$0xff]
          %v1857 = vld [vmem:[#allocation2 + $0x88] sm:$0xff]
          %v1858 = vld [vmem:[#allocation2 + $0x90] sm:$0xff]
          %v1859 = vld [vmem:[#allocation2 + $0x98] sm:$0xff]
          %v1860 = vld [vmem:[#allocation2 + $0xa0] sm:$0xff]
          %v1861 = vld [vmem:[#allocation2 + $0xa8] sm:$0xff]
          %v1862 = vld [vmem:[#allocation2 + $0xb0] sm:$0xff]
          %v1863 = vld [vmem:[#allocation2 + $0xb8] sm:$0xff]
          %v1864 = vld [vmem:[#allocation2 + $0xc0] sm:$0xff]
          %v1865 = vld [vmem:[#allocation2 + $0xc8] sm:$0xff]
          %v1866 = vld [vmem:[#allocation2 + $0xd0] sm:$0xff]
          %v1867 = vld [vmem:[#allocation2 + $0xd8] sm:$0xff]
          %v1868 = vld [vmem:[#allocation2 + $0xe0] sm:$0xff]
          %v1869 = vld [vmem:[#allocation2 + $0xe8] sm:$0xff]
          %v1870 = vld [vmem:[#allocation2 + $0xf0] sm:$0xff]
          %v1871 = vld [vmem:[#allocation2 + $0xf8] sm:$0xff]
          %v1872 = vld [vmem:[#allocation2 + $0x100] sm:$0xff]
          %v1873 = vld [vmem:[#allocation2 + $0x108] sm:$0xff]
          %v1874 = vld [vmem:[#allocation2 + $0x110] sm:$0xff]
          %v1875 = vld [vmem:[#allocation2 + $0x118] sm:$0xff]
          %v1876 = vld [vmem:[#allocation2 + $0x120] sm:$0xff]
          %v1877 = vld [vmem:[#allocation2 + $0x128] sm:$0xff]
          %v1878 = vld [vmem:[#allocation2 + $0x130] sm:$0xff]
          %v1879 = vld [vmem:[#allocation2 + $0x138] sm:$0xff]
          %v1880 = vld [vmem:[#allocation2 + $0x140] sm:$0xff]
          %v1881 = vld [vmem:[#allocation2 + $0x148] sm:$0xff]
          %v1882 = vld [vmem:[#allocation2 + $0x150] sm:$0xff]
          %v1883 = vld [vmem:[#allocation2 + $0x158] sm:$0xff]
          %v1884 = vld [vmem:[#allocation2 + $0x160] sm:$0xff]
          %v1885 = vld [vmem:[#allocation2 + $0x168] sm:$0xff]
          %v1886 = vld [vmem:[#allocation2 + $0x170] sm:$0xff]
          %v1887 = vld [vmem:[#allocation2 + $0x178] sm:$0xff]
          %v1888 = vld [vmem:[#allocation2 + $0x180] sm:$0xff]
          %v1889 = vld [vmem:[#allocation2 + $0x188] sm:$0xff]
          %v1890 = vld [vmem:[#allocation2 + $0x190] sm:$0xff]
          %v1891 = vld [vmem:[#allocation2 + $0x198] sm:$0xff]
          %v1892 = vld [vmem:[#allocation2 + $0x1a0] sm:$0xff]
          %v1893 = vld [vmem:[#allocation2 + $0x1a8] sm:$0xff]
          %v1894 = vld [vmem:[#allocation2 + $0x1b0] sm:$0xff]
          %v1895 = vld [vmem:[#allocation2 + $0x1b8] sm:$0xff]
          %v1896 = vld [vmem:[#allocation2 + $0x1c0] sm:$0xff]
          %v1897 = vld [vmem:[#allocation2 + $0x1c8] sm:$0xff]
          %v1898 = vld [vmem:[#allocation2 + $0x1d0] sm:$0xff]
          %v1899 = vld [vmem:[#allocation2 + $0x1d8] sm:$0xff]
          %v1900 = vld [vmem:[#allocation2 + $0x1e0] sm:$0xff]
          %v1901 = vld [vmem:[#allocation2 + $0x1e8] sm:$0xff]
          %v1902 = vld [vmem:[#allocation2 + $0x1f0] sm:$0xff]
          %v1903 = vld [vmem:[#allocation2 + $0x1f8] sm:$0xff]
          %v1904 = vld [vmem:[#allocation2 + $0x200] sm:$0xff]
          %v1905 = vld [vmem:[#allocation2 + $0x208] sm:$0xff]
          %v1906 = vld [vmem:[#allocation2 + $0x210] sm:$0xff]
          %v1907 = vld [vmem:[#allocation2 + $0x218] sm:$0xff]
          %v1908 = vld [vmem:[#allocation2 + $0x220] sm:$0xff]
          %v1909 = vld [vmem:[#allocation2 + $0x228] sm:$0xff]
          %v1910 = vld [vmem:[#allocation2 + $0x230] sm:$0xff]
          %v1911 = vld [vmem:[#allocation2 + $0x238] sm:$0xff]
          %v1912 = vld [vmem:[#allocation2 + $0x240] sm:$0xff]
          %v1913 = vld [vmem:[#allocation2 + $0x248] sm:$0xff]
          %v1914 = vld [vmem:[#allocation2 + $0x250] sm:$0xff]
          %v1915 = vld [vmem:[#allocation2 + $0x258] sm:$0xff]
          %v1916 = vld [vmem:[#allocation2 + $0x260] sm:$0xff]
          %v1917 = vld [vmem:[#allocation2 + $0x268] sm:$0xff]
          %v1918 = vld [vmem:[#allocation2 + $0x270] sm:$0xff]
          %v1919 = vld [vmem:[#allocation2 + $0x278] sm:$0xff]
          %v1920 = vld [vmem:[#allocation2 + $0x280] sm:$0xff]
          %v1921 = vld [vmem:[#allocation2 + $0x288] sm:$0xff]
          %v1922 = vld [vmem:[#allocation2 + $0x290] sm:$0xff]
          %v1923 = vld [vmem:[#allocation2 + $0x298] sm:$0xff]
          %v1924 = vld [vmem:[#allocation2 + $0x2a0] sm:$0xff]
          %v1925 = vld [vmem:[#allocation2 + $0x2a8] sm:$0xff]
          %v1926 = vld [vmem:[#allocation2 + $0x2b0] sm:$0xff]
          %v1927 = vld [vmem:[#allocation2 + $0x2b8] sm:$0xff]
          %v1928 = vld [vmem:[#allocation2 + $0x2c0] sm:$0xff]
          %v1929 = vld [vmem:[#allocation2 + $0x2c8] sm:$0xff]
          %v1930 = vld [vmem:[#allocation2 + $0x2d0] sm:$0xff]
          %v1931 = vld [vmem:[#allocation2 + $0x2d8] sm:$0xff]
          %v1932 = vld [vmem:[#allocation2 + $0x2e0] sm:$0xff]
          %v1933 = vld [vmem:[#allocation2 + $0x2e8] sm:$0xff]
          %v1934 = vld [vmem:[#allocation2 + $0x2f0] sm:$0xff]
          %v1935 = vld [vmem:[#allocation2 + $0x2f8] sm:$0xff]
          %v1936 = vld [vmem:[#allocation2 + $0x300] sm:$0xff]
          %v1937 = vld [vmem:[#allocation2 + $0x308] sm:$0xff]
          %v1938 = vld [vmem:[#allocation2 + $0x310] sm:$0xff]
          %v1939 = vld [vmem:[#allocation2 + $0x318] sm:$0xff]
          %v1940 = vld [vmem:[#allocation2 + $0x320] sm:$0xff]
          %v1941 = vld [vmem:[#allocation2 + $0x328] sm:$0xff]
          %v1942 = vld [vmem:[#allocation2 + $0x330] sm:$0xff]
          %v1943 = vld [vmem:[#allocation2 + $0x338] sm:$0xff]
          %v1944 = vld [vmem:[#allocation2 + $0x340] sm:$0xff]
          %v1945 = vld [vmem:[#allocation2 + $0x348] sm:$0xff]
          %v1946 = vld [vmem:[#allocation2 + $0x350] sm:$0xff]
          %v1947 = vld [vmem:[#allocation2 + $0x358] sm:$0xff]
          %v1948 = vld [vmem:[#allocation2 + $0x360] sm:$0xff]
          %v1949 = vld [vmem:[#allocation2 + $0x368] sm:$0xff]
          %v1950 = vld [vmem:[#allocation2 + $0x370] sm:$0xff]
          %v1951 = vld [vmem:[#allocation2 + $0x378] sm:$0xff]
          %v1952 = vld [vmem:[#allocation2 + $0x380] sm:$0xff]
          %v1953 = vld [vmem:[#allocation2 + $0x388] sm:$0xff]
          %v1954 = vld [vmem:[#allocation2 + $0x390] sm:$0xff]
          %v1955 = vld [vmem:[#allocation2 + $0x398] sm:$0xff]
          %v1956 = vld [vmem:[#allocation2 + $0x3a0] sm:$0xff]
          %v1957 = vld [vmem:[#allocation2 + $0x3a8] sm:$0xff]
          %v1958 = vld [vmem:[#allocation2 + $0x3b0] sm:$0xff]
          %v1959 = vld [vmem:[#allocation2 + $0x3b8] sm:$0xff]
          %v1960 = vld [vmem:[#allocation2 + $0x3c0] sm:$0xff]
          %v1961 = vld [vmem:[#allocation2 + $0x3c8] sm:$0xff]
          %v1962 = vld [vmem:[#allocation2 + $0x3d0] sm:$0xff]
          %v1963 = vld [vmem:[#allocation2 + $0x3d8] sm:$0xff]
          %v1964 = vld [vmem:[#allocation2 + $0x3e0] sm:$0xff]
          %v1965 = vld [vmem:[#allocation2 + $0x3e8] sm:$0xff]
          %v1966 = vld [vmem:[#allocation2 + $0x3f0] sm:$0xff]
          %v1967 = vld [vmem:[#allocation2 + $0x3f8] sm:$0xff]
          %v1968 = vld [vmem:[#allocation8] sm:$0x3]
          %v1970 = vperm.slane %v1968, 0
          %v1971 = vperm.slane %v1968, 1
          %v1974 = vadd.f32 %v1840, %v1970
          %v1975 = vadd.f32 %v1841, %v1971
          %v1976 = vadd.f32 %v1842, %v1970
          %v1977 = vadd.f32 %v1843, %v1971
          %v1978 = vadd.f32 %v1844, %v1970
          %v1979 = vadd.f32 %v1845, %v1971
          %v1980 = vadd.f32 %v1846, %v1970
          %v1981 = vadd.f32 %v1847, %v1971
          %v1982 = vadd.f32 %v1848, %v1970
          %v1983 = vadd.f32 %v1849, %v1971
          %v1984 = vadd.f32 %v1850, %v1970
          %v1985 = vadd.f32 %v1851, %v1971
          %v1986 = vadd.f32 %v1852, %v1970
          %v1987 = vadd.f32 %v1853, %v1971
          %v1988 = vadd.f32 %v1854, %v1970
          %v1989 = vadd.f32 %v1855, %v1971
          %v1990 = vadd.f32 %v1856, %v1970
          %v1991 = vadd.f32 %v1857, %v1971
          %v1992 = vadd.f32 %v1858, %v1970
          %v1993 = vadd.f32 %v1859, %v1971
          %v1994 = vadd.f32 %v1860, %v1970
          %v1995 = vadd.f32 %v1861, %v1971
          %v1996 = vadd.f32 %v1862, %v1970
          %v1997 = vadd.f32 %v1863, %v1971
          %v1998 = vadd.f32 %v1864, %v1970
          %v1999 = vadd.f32 %v1865, %v1971
          %v2000 = vadd.f32 %v1866, %v1970
          %v2001 = vadd.f32 %v1867, %v1971
          %v2002 = vadd.f32 %v1868, %v1970
          %v2003 = vadd.f32 %v1869, %v1971
          %v2004 = vadd.f32 %v1870, %v1970
          %v2005 = vadd.f32 %v1871, %v1971
          %v2006 = vadd.f32 %v1872, %v1970
          %v2007 = vadd.f32 %v1873, %v1971
          %v2008 = vadd.f32 %v1874, %v1970
          %v2009 = vadd.f32 %v1875, %v1971
          %v2010 = vadd.f32 %v1876, %v1970
          %v2011 = vadd.f32 %v1877, %v1971
          %v2012 = vadd.f32 %v1878, %v1970
          %v2013 = vadd.f32 %v1879, %v1971
          %v2014 = vadd.f32 %v1880, %v1970
          %v2015 = vadd.f32 %v1881, %v1971
          %v2016 = vadd.f32 %v1882, %v1970
          %v2017 = vadd.f32 %v1883, %v1971
          %v2018 = vadd.f32 %v1884, %v1970
          %v2019 = vadd.f32 %v1885, %v1971
          %v2020 = vadd.f32 %v1886, %v1970
          %v2021 = vadd.f32 %v1887, %v1971
          %v2022 = vadd.f32 %v1888, %v1970
          %v2023 = vadd.f32 %v1889, %v1971
          %v2024 = vadd.f32 %v1890, %v1970
          %v2025 = vadd.f32 %v1891, %v1971
          %v2026 = vadd.f32 %v1892, %v1970
          %v2027 = vadd.f32 %v1893, %v1971
          %v2028 = vadd.f32 %v1894, %v1970
          %v2029 = vadd.f32 %v1895, %v1971
          %v2030 = vadd.f32 %v1896, %v1970
          %v2031 = vadd.f32 %v1897, %v1971
          %v2032 = vadd.f32 %v1898, %v1970
          %v2033 = vadd.f32 %v1899, %v1971
          %v2034 = vadd.f32 %v1900, %v1970
          %v2035 = vadd.f32 %v1901, %v1971
          %v2036 = vadd.f32 %v1902, %v1970
          %v2037 = vadd.f32 %v1903, %v1971
          %v2038 = vadd.f32 %v1904, %v1970
          %v2039 = vadd.f32 %v1905, %v1971
          %v2040 = vadd.f32 %v1906, %v1970
          %v2041 = vadd.f32 %v1907, %v1971
          %v2042 = vadd.f32 %v1908, %v1970
          %v2043 = vadd.f32 %v1909, %v1971
          %v2044 = vadd.f32 %v1910, %v1970
          %v2045 = vadd.f32 %v1911, %v1971
          %v2046 = vadd.f32 %v1912, %v1970
          %v2047 = vadd.f32 %v1913, %v1971
          %v2048 = vadd.f32 %v1914, %v1970
          %v2049 = vadd.f32 %v1915, %v1971
          %v2050 = vadd.f32 %v1916, %v1970
          %v2051 = vadd.f32 %v1917, %v1971
          %v2052 = vadd.f32 %v1918, %v1970
          %v2053 = vadd.f32 %v1919, %v1971
          %v2054 = vadd.f32 %v1920, %v1970
          %v2055 = vadd.f32 %v1921, %v1971
          %v2056 = vadd.f32 %v1922, %v1970
          %v2057 = vadd.f32 %v1923, %v1971
          %v2058 = vadd.f32 %v1924, %v1970
          %v2059 = vadd.f32 %v1925, %v1971
          %v2060 = vadd.f32 %v1926, %v1970
          %v2061 = vadd.f32 %v1927, %v1971
          %v2062 = vadd.f32 %v1928, %v1970
          %v2063 = vadd.f32 %v1929, %v1971
          %v2064 = vadd.f32 %v1930, %v1970
          %v2065 = vadd.f32 %v1931, %v1971
          %v2066 = vadd.f32 %v1932, %v1970
          %v2067 = vadd.f32 %v1933, %v1971
          %v2068 = vadd.f32 %v1934, %v1970
          %v2069 = vadd.f32 %v1935, %v1971
          %v2070 = vadd.f32 %v1936, %v1970
          %v2071 = vadd.f32 %v1937, %v1971
          %v2072 = vadd.f32 %v1938, %v1970
          %v2073 = vadd.f32 %v1939, %v1971
          %v2074 = vadd.f32 %v1940, %v1970
          %v2075 = vadd.f32 %v1941, %v1971
          %v2076 = vadd.f32 %v1942, %v1970
          %v2077 = vadd.f32 %v1943, %v1971
          %v2078 = vadd.f32 %v1944, %v1970
          %v2079 = vadd.f32 %v1945, %v1971
          %v2080 = vadd.f32 %v1946, %v1970
          %v2081 = vadd.f32 %v1947, %v1971
          %v2082 = vadd.f32 %v1948, %v1970
          %v2083 = vadd.f32 %v1949, %v1971
          %v2084 = vadd.f32 %v1950, %v1970
          %v2085 = vadd.f32 %v1951, %v1971
          %v2086 = vadd.f32 %v1952, %v1970
          %v2087 = vadd.f32 %v1953, %v1971
          %v2088 = vadd.f32 %v1954, %v1970
          %v2089 = vadd.f32 %v1955, %v1971
          %v2090 = vadd.f32 %v1956, %v1970
          %v2091 = vadd.f32 %v1957, %v1971
          %v2092 = vadd.f32 %v1958, %v1970
          %v2093 = vadd.f32 %v1959, %v1971
          %v2094 = vadd.f32 %v1960, %v1970
          %v2095 = vadd.f32 %v1961, %v1971
          %v2096 = vadd.f32 %v1962, %v1970
          %v2097 = vadd.f32 %v1963, %v1971
          %v2098 = vadd.f32 %v1964, %v1970
          %v2099 = vadd.f32 %v1965, %v1971
          %v2100 = vadd.f32 %v1966, %v1970
          %v2101 = vadd.f32 %v1967, %v1971
          %2102 = vst [vmem:[%s275] sm:$0xff] %v1974
          %2103 = vst [vmem:[%s275 + $0x8] sm:$0xff] %v1975
          %2104 = vst [vmem:[%s275 + $0x10] sm:$0xff] %v1976
          %2105 = vst [vmem:[%s275 + $0x18] sm:$0xff] %v1977
          %2106 = vst [vmem:[%s275 + $0x20] sm:$0xff] %v1978
          %2107 = vst [vmem:[%s275 + $0x28] sm:$0xff] %v1979
          %2108 = vst [vmem:[%s275 + $0x30] sm:$0xff] %v1980
          %2109 = vst [vmem:[%s275 + $0x38] sm:$0xff] %v1981
          %2110 = vst [vmem:[%s275 + $0x40] sm:$0xff] %v1982
          %2111 = vst [vmem:[%s275 + $0x48] sm:$0xff] %v1983
          %2112 = vst [vmem:[%s275 + $0x50] sm:$0xff] %v1984
          %2113 = vst [vmem:[%s275 + $0x58] sm:$0xff] %v1985
          %2114 = vst [vmem:[%s275 + $0x60] sm:$0xff] %v1986
          %2115 = vst [vmem:[%s275 + $0x68] sm:$0xff] %v1987
          %2116 = vst [vmem:[%s275 + $0x70] sm:$0xff] %v1988
          %2117 = vst [vmem:[%s275 + $0x78] sm:$0xff] %v1989
          %2118 = vst [vmem:[%s275 + $0x80] sm:$0xff] %v1990
          %2119 = vst [vmem:[%s275 + $0x88] sm:$0xff] %v1991
          %2120 = vst [vmem:[%s275 + $0x90] sm:$0xff] %v1992
          %2121 = vst [vmem:[%s275 + $0x98] sm:$0xff] %v1993
          %2122 = vst [vmem:[%s275 + $0xa0] sm:$0xff] %v1994
          %2123 = vst [vmem:[%s275 + $0xa8] sm:$0xff] %v1995
          %2124 = vst [vmem:[%s275 + $0xb0] sm:$0xff] %v1996
          %2125 = vst [vmem:[%s275 + $0xb8] sm:$0xff] %v1997
          %2126 = vst [vmem:[%s275 + $0xc0] sm:$0xff] %v1998
          %2127 = vst [vmem:[%s275 + $0xc8] sm:$0xff] %v1999
          %2128 = vst [vmem:[%s275 + $0xd0] sm:$0xff] %v2000
          %2129 = vst [vmem:[%s275 + $0xd8] sm:$0xff] %v2001
          %2130 = vst [vmem:[%s275 + $0xe0] sm:$0xff] %v2002
          %2131 = vst [vmem:[%s275 + $0xe8] sm:$0xff] %v2003
          %2132 = vst [vmem:[%s275 + $0xf0] sm:$0xff] %v2004
          %2133 = vst [vmem:[%s275 + $0xf8] sm:$0xff] %v2005
          %2134 = vst [vmem:[%s275 + $0x100] sm:$0xff] %v2006
          %2135 = vst [vmem:[%s275 + $0x108] sm:$0xff] %v2007
          %2136 = vst [vmem:[%s275 + $0x110] sm:$0xff] %v2008
          %2137 = vst [vmem:[%s275 + $0x118] sm:$0xff] %v2009
          %2138 = vst [vmem:[%s275 + $0x120] sm:$0xff] %v2010
          %2139 = vst [vmem:[%s275 + $0x128] sm:$0xff] %v2011
          %2140 = vst [vmem:[%s275 + $0x130] sm:$0xff] %v2012
          %2141 = vst [vmem:[%s275 + $0x138] sm:$0xff] %v2013
          %2142 = vst [vmem:[%s275 + $0x140] sm:$0xff] %v2014
          %2143 = vst [vmem:[%s275 + $0x148] sm:$0xff] %v2015
          %2144 = vst [vmem:[%s275 + $0x150] sm:$0xff] %v2016
          %2145 = vst [vmem:[%s275 + $0x158] sm:$0xff] %v2017
          %2146 = vst [vmem:[%s275 + $0x160] sm:$0xff] %v2018
          %2147 = vst [vmem:[%s275 + $0x168] sm:$0xff] %v2019
          %2148 = vst [vmem:[%s275 + $0x170] sm:$0xff] %v2020
          %2149 = vst [vmem:[%s275 + $0x178] sm:$0xff] %v2021
          %2150 = vst [vmem:[%s275 + $0x180] sm:$0xff] %v2022
          %2151 = vst [vmem:[%s275 + $0x188] sm:$0xff] %v2023
          %2152 = vst [vmem:[%s275 + $0x190] sm:$0xff] %v2024
          %2153 = vst [vmem:[%s275 + $0x198] sm:$0xff] %v2025
          %2154 = vst [vmem:[%s275 + $0x1a0] sm:$0xff] %v2026
          %2155 = vst [vmem:[%s275 + $0x1a8] sm:$0xff] %v2027
          %2156 = vst [vmem:[%s275 + $0x1b0] sm:$0xff] %v2028
          %2157 = vst [vmem:[%s275 + $0x1b8] sm:$0xff] %v2029
          %2158 = vst [vmem:[%s275 + $0x1c0] sm:$0xff] %v2030
          %2159 = vst [vmem:[%s275 + $0x1c8] sm:$0xff] %v2031
          %2160 = vst [vmem:[%s275 + $0x1d0] sm:$0xff] %v2032
          %2161 = vst [vmem:[%s275 + $0x1d8] sm:$0xff] %v2033
          %2162 = vst [vmem:[%s275 + $0x1e0] sm:$0xff] %v2034
          %2163 = vst [vmem:[%s275 + $0x1e8] sm:$0xff] %v2035
          %2164 = vst [vmem:[%s275 + $0x1f0] sm:$0xff] %v2036
          %2165 = vst [vmem:[%s275 + $0x1f8] sm:$0xff] %v2037
          %2166 = vst [vmem:[%s275 + $0x200] sm:$0xff] %v2038
          %2167 = vst [vmem:[%s275 + $0x208] sm:$0xff] %v2039
          %2168 = vst [vmem:[%s275 + $0x210] sm:$0xff] %v2040
          %2169 = vst [vmem:[%s275 + $0x218] sm:$0xff] %v2041
          %2170 = vst [vmem:[%s275 + $0x220] sm:$0xff] %v2042
          %2171 = vst [vmem:[%s275 + $0x228] sm:$0xff] %v2043
          %2172 = vst [vmem:[%s275 + $0x230] sm:$0xff] %v2044
          %2173 = vst [vmem:[%s275 + $0x238] sm:$0xff] %v2045
          %2174 = vst [vmem:[%s275 + $0x240] sm:$0xff] %v2046
          %2175 = vst [vmem:[%s275 + $0x248] sm:$0xff] %v2047
          %2176 = vst [vmem:[%s275 + $0x250] sm:$0xff] %v2048
          %2177 = vst [vmem:[%s275 + $0x258] sm:$0xff] %v2049
          %2178 = vst [vmem:[%s275 + $0x260] sm:$0xff] %v2050
          %2179 = vst [vmem:[%s275 + $0x268] sm:$0xff] %v2051
          %2180 = vst [vmem:[%s275 + $0x270] sm:$0xff] %v2052
          %2181 = vst [vmem:[%s275 + $0x278] sm:$0xff] %v2053
          %2182 = vst [vmem:[%s275 + $0x280] sm:$0xff] %v2054
          %2183 = vst [vmem:[%s275 + $0x288] sm:$0xff] %v2055
          %2184 = vst [vmem:[%s275 + $0x290] sm:$0xff] %v2056
          %2185 = vst [vmem:[%s275 + $0x298] sm:$0xff] %v2057
          %2186 = vst [vmem:[%s275 + $0x2a0] sm:$0xff] %v2058
          %2187 = vst [vmem:[%s275 + $0x2a8] sm:$0xff] %v2059
          %2188 = vst [vmem:[%s275 + $0x2b0] sm:$0xff] %v2060
          %2189 = vst [vmem:[%s275 + $0x2b8] sm:$0xff] %v2061
          %2190 = vst [vmem:[%s275 + $0x2c0] sm:$0xff] %v2062
          %2191 = vst [vmem:[%s275 + $0x2c8] sm:$0xff] %v2063
          %2192 = vst [vmem:[%s275 + $0x2d0] sm:$0xff] %v2064
          %2193 = vst [vmem:[%s275 + $0x2d8] sm:$0xff] %v2065
          %2194 = vst [vmem:[%s275 + $0x2e0] sm:$0xff] %v2066
          %2195 = vst [vmem:[%s275 + $0x2e8] sm:$0xff] %v2067
          %2196 = vst [vmem:[%s275 + $0x2f0] sm:$0xff] %v2068
          %2197 = vst [vmem:[%s275 + $0x2f8] sm:$0xff] %v2069
          %2198 = vst [vmem:[%s275 + $0x300] sm:$0xff] %v2070
          %2199 = vst [vmem:[%s275 + $0x308] sm:$0xff] %v2071
          %2200 = vst [vmem:[%s275 + $0x310] sm:$0xff] %v2072
          %2201 = vst [vmem:[%s275 + $0x318] sm:$0xff] %v2073
          %2202 = vst [vmem:[%s275 + $0x320] sm:$0xff] %v2074
          %2203 = vst [vmem:[%s275 + $0x328] sm:$0xff] %v2075
          %2204 = vst [vmem:[%s275 + $0x330] sm:$0xff] %v2076
          %2205 = vst [vmem:[%s275 + $0x338] sm:$0xff] %v2077
          %2206 = vst [vmem:[%s275 + $0x340] sm:$0xff] %v2078
          %2207 = vst [vmem:[%s275 + $0x348] sm:$0xff] %v2079
          %2208 = vst [vmem:[%s275 + $0x350] sm:$0xff] %v2080
          %2209 = vst [vmem:[%s275 + $0x358] sm:$0xff] %v2081
          %2210 = vst [vmem:[%s275 + $0x360] sm:$0xff] %v2082
          %2211 = vst [vmem:[%s275 + $0x368] sm:$0xff] %v2083
          %2212 = vst [vmem:[%s275 + $0x370] sm:$0xff] %v2084
          %2213 = vst [vmem:[%s275 + $0x378] sm:$0xff] %v2085
          %2214 = vst [vmem:[%s275 + $0x380] sm:$0xff] %v2086
          %2215 = vst [vmem:[%s275 + $0x388] sm:$0xff] %v2087
          %2216 = vst [vmem:[%s275 + $0x390] sm:$0xff] %v2088
          %2217 = vst [vmem:[%s275 + $0x398] sm:$0xff] %v2089
          %2218 = vst [vmem:[%s275 + $0x3a0] sm:$0xff] %v2090
          %2219 = vst [vmem:[%s275 + $0x3a8] sm:$0xff] %v2091
          %2220 = vst [vmem:[%s275 + $0x3b0] sm:$0xff] %v2092
          %2221 = vst [vmem:[%s275 + $0x3b8] sm:$0xff] %v2093
          %2222 = vst [vmem:[%s275 + $0x3c0] sm:$0xff] %v2094
          %2223 = vst [vmem:[%s275 + $0x3c8] sm:$0xff] %v2095
          %2224 = vst [vmem:[%s275 + $0x3d0] sm:$0xff] %v2096
          %2225 = vst [vmem:[%s275 + $0x3d8] sm:$0xff] %v2097
          %2226 = vst [vmem:[%s275 + $0x3e0] sm:$0xff] %v2098
          %2227 = vst [vmem:[%s275 + $0x3e8] sm:$0xff] %v2099
          %2228 = vst [vmem:[%s275 + $0x3f0] sm:$0xff] %v2100
          %2229 = vst [vmem:[%s275 + $0x3f8] sm:$0xff] %v2101
        $region52: #{tpu_custom_call.1} parent=31 // pred_fallthru
          _
        %s2230 = sand.u32 %s132, 1
        %s2231 = scalar_lea.sflag [#allocation5], %s2230
        %s2232 = sand.u32 %s132, 1
        %s2233 = smul.addr %s2232, 1024
        %s2234 = scalar_lea.vmem [#allocation9], %s2233
        // Predicated region
        $region53: #{tpu_custom_call.1} parent=31 // pred_check
          %p2235 = pneg %p142
        $region54: #{tpu_custom_call.1} parent=31 // pred_check_branch
          %2237 = sbr.rel (%p2235) target = $region56
        $region55: #{tpu_custom_call.1} parent=31 // pred_region
          %s2238 = smul.u32 64, %s26
          %s2239 = smul.u32 2, %s27
          %s2240 = ssub.s32 65, %s2238
          %p2241 = scmp.lt.s32.totalorder %s2240, 64
          %s2242 = scalar_select %p2241, %s2240, 64
          %s2243 = smul.u32 8, %s2242
          %s2244 = smul.u32 %s2243, 2
          %s2245 = ssub.s32 1024, %s2244
          %s2246 = sshll.u32 %s2245, 4
          %2247 = vsyncadd %s2231, %s2246
          %p2248 = scmp.ne.s32.totalorder 0, %s2244
          %s2249 = smul.addr %s2238, 2
          %s2250 = sadd.s32 %s2239, %s2249
          %s2251 = smul.addr %s2250, 8
          %s2252 = scalar_lea.hbm %s3, %s2251
          %s2253 = smul.u32 16, %s2242
          %s2254 = sshll.u32 %s2234, 4
          %s2255 = int_to_ptr.vmem [resolvable:$true] %s2254
          %s2256 = sshll.u32 %s2252, 4
          %s2257 = int_to_ptr.hbm [resolvable:$true] %s2256
          %s2258 = sshll.u32 %s2253, 4
          %2262 = dma.vmem_to_hbm [thread:$0]  (%p2248), %s2255, %s2258, %s2257, %s2231, 256, 256, 16
        $region56: #{tpu_custom_call.1} parent=31 // pred_fallthru
          _
      $region32: #{tpu_custom_call.1} parent=5 // pred_fallthru
        _
      %p2263 = scmp.le.s32.totalorder 2, %s16
      // Predicated region
      $region57: #{tpu_custom_call.1} parent=5 // pred_check
        %p2264 = pneg %p2263
      $region58: #{tpu_custom_call.1} parent=5 // pred_check_branch
        %2266 = sbr.rel (%p2264) target = $region60
      $region59: #{tpu_custom_call.1} parent=5 // pred_region
        %s2267 = ssub.s32 %s16, 2
        // Predicated region
        $region61: #{tpu_custom_call.1} parent=59 // pred_check
          %p2268 = pneg %p148
        $region62: #{tpu_custom_call.1} parent=59 // pred_check_branch
          %2270 = sbr.rel (%p2268) target = $region64
        $region63: #{tpu_custom_call.1} parent=59 // pred_region
          %s2271 = sand.u32 %s133, 1
          %s2272 = scalar_lea.sflag [#allocation5], %s2271
          %s2273 = sand.u32 %s133, 1
          %s2274 = smul.addr %s2273, 1024
          %s2275 = scalar_lea.vmem [#allocation9], %s2274
          %2277 = dma.done %s2272, 16384
        $region64: #{tpu_custom_call.1} parent=59 // pred_fallthru
          _
      $region60: #{tpu_custom_call.1} parent=5 // pred_fallthru
        _
    $region6: #{tpu_custom_call.1} parent=1 // loop_footer
      %s20 = sadd.s32 1, %s16
    $region7: #{tpu_custom_call.1} parent=1 // loop_footer_branch
      %15 = sbr.rel target = $region3
    $region8: #{tpu_custom_call.1} parent=1 // loop_exit
      _
    %2278 = vsyncpa [#allocation4], 1
    %s2279 = scalar_lea.sflag [#allocation4], 1
    %2280 = vsyncpa %s2279, 1
    %2281 = vsyncpa [#allocation7], 1
    %2282 = vsyncpa [#allocation5], 1
    %s2283 = scalar_lea.sflag [#allocation5], 1
    %2284 = vsyncpa %s2283, 1

</llo_original>
